<compile_context>
chip_gen: v7x
topology: tpu7x:2x2x1
jax: 0.10.0
libtpu: 0.0.40
codegen_flags: <defaults>
</compile_context>

<pallas_src>
import functools

import jax
import jax.numpy as jnp
import numpy as np
from jax.experimental import pallas as pl
from jax.experimental.pallas import tpu as pltpu


# ----------------------------------------------------------------------------
# Kernel: 3x3 conv (stride 1, pad 1, no bias) on one row strip, channels-last,
# as a single im2col matmul.
# ----------------------------------------------------------------------------
def _conv3x3_strip_kernel(xc_ref, xt_ref, xb_ref, w_ref, o_ref):
    # xc_ref: (1, TH, W, Cin)   centre rows of the strip
    # xt_ref: (1, 1,  W, Cin)   row above the strip (clamped; zeroed at top edge)
    # xb_ref: (1, 1,  W, Cin)   row below the strip (clamped; zeroed at bottom edge)
    # w_ref : (9*Cin, Cout)     im2col weights, K index = (di*3 + dj)*Cin + c
    # o_ref : (1, TH, W, Cout)  conv output for the strip
    s = pl.program_id(1)
    n_s = pl.num_programs(1)
    _, TH, W, Cin = xc_ref.shape
    Cout = w_ref.shape[1]

    # Halo rows; zero them at the image borders (this realizes padding=1).
    # jnp.where (not multiply-by-0) so non-finite values in the clamped-in
    # boundary row cannot leak through.
    zrow = jnp.zeros((1, W, Cin), xc_ref.dtype)
    top = jnp.where(s == 0, zrow, xt_ref[0])
    bot = jnp.where(s == n_s - 1, zrow, xb_ref[0])

    # (TH+2, W, Cin) strip: rows -1 .. TH relative to the strip start.
    xr = jnp.concatenate([top, xc_ref[0], bot], axis=0)

    # Column-shifted copies for the left/right taps (zero at the W borders).
    # Only two extra strip copies; the di (row) shift below is a free
    # major-axis slice, so no (W+2) padded tensor and no per-tap misaligned
    # window materialization.
    zcol = jnp.zeros((TH + 2, 1, Cin), xr.dtype)
    x_l = jnp.concatenate([zcol, xr[:, :W - 1, :]], axis=1)   # col w <- col w-1
    x_r = jnp.concatenate([xr[:, 1:, :], zcol], axis=1)       # col w <- col w+1
    shifted = (x_l, xr, x_r)                                   # dj = 0, 1, 2

    # im2col LHS: lane index k = (di*3 + dj)*Cin + c, row index m = h*W + w.
    taps = [shifted[dj][di:di + TH] for di in range(3) for dj in range(3)]
    lhs = jnp.concatenate(taps, axis=-1).reshape(TH * W, 9 * Cin)

    # Single MXU matmul, operands in native dtype, f32 accumulation.
    acc = jnp.dot(lhs, w_ref[...], preferred_element_type=jnp.float32)

    o_ref[0] = acc.reshape(TH, W, Cout).astype(o_ref.dtype)


# ----------------------------------------------------------------------------
# Generation-aware VMEM budgeting / strip-size picking.
# ----------------------------------------------------------------------------
def _vmem_capacity_bytes():
    # Per-core VMEM capacity; fall back to the v7x 64 MiB floor so a budget
    # derived here is safe on every generation.
    try:
        return int(pltpu.get_tpu_info().vmem_capacity_bytes)
    except Exception:
        return 64 * 1024 * 1024


def _pick_strip_rows(H, W, Cin, Cout, itemsize, vmem_cap, requested=None):
    if requested is not None:
        return max(1, min(int(requested), H))
    # Working-set budget per strip: ~1/4 of per-core VMEM, capped at 24 MiB
    # (review: 6 MiB strips left pipeline efficiency / MXU M on the table;
    #  v7x has only 64 MiB per TC so re-derive rather than hardcode).
    budget = min(vmem_cap // 4, 24 * 1024 * 1024)
    # Per-row bytes: centre block (x2 pipeline buffers) + 3 shifted strip
    # copies + (9*Cin)-wide im2col LHS, plus output block (x2) + f32 matmul
    # result.
    per_row = W * Cin * itemsize * (2 + 3 + 9) + W * Cout * (2 * itemsize + 4)
    return max(1, min(H, budget // max(per_row, 1)))


# ----------------------------------------------------------------------------
# Forward pass: Conv2d(n_feat -> 2*n_feat, 3x3, pad 1, no bias) + PixelShuffle(2)
# ----------------------------------------------------------------------------
@functools.partial(jax.jit, static_argnames=("strip_rows",))
def upsample_forward(x_nchw, w_oihw, strip_rows=None):
    B, Cin, H, W = x_nchw.shape
    Cout = w_oihw.shape[0]
    assert w_oihw.shape == (Cout, Cin, 3, 3) and Cout % 4 == 0
    Cq = Cout // 4

    # Channels-last activations; im2col weights (9*Cin, Cout) with
    # K index = (di*3 + dj)*Cin + c  (cross-correlation, matches PyTorch).
    x = jnp.transpose(x_nchw, (0, 2, 3, 1))                       # NCHW -> NHWC
    w = jnp.transpose(w_oihw, (2, 3, 1, 0)).reshape(9 * Cin, Cout)

    vmem_cap = _vmem_capacity_bytes()
    TH = _pick_strip_rows(H, W, Cin, Cout, x.dtype.itemsize, vmem_cap, strip_rows)

    # Handle H not divisible by TH: pad rows once with zeros (zero rows below
    # the image are exactly the conv's padding semantics), slice afterwards.
    Hp = ((H + TH - 1) // TH) * TH
    if Hp != H:
        x = jnp.pad(x, ((0, 0), (0, Hp - H), (0, 0), (0, 0)))
    n_strips = Hp // TH

    # Note: weight block has a constant index_map, so Pallas does not re-issue
    # its DMA across grid steps; the second (double-) buffer it keeps resident
    # is 9*Cin*Cout*itemsize bytes, negligible next to the strip working set.
    y = pl.pallas_call(
        _conv3x3_strip_kernel,
        out_shape=jax.ShapeDtypeStruct((B, Hp, W, Cout), x.dtype),
        grid=(B, n_strips),
        in_specs=[
            pl.BlockSpec((1, TH, W, Cin), lambda b, s: (b, s, 0, 0)),
            pl.BlockSpec((1, 1, W, Cin),
                         lambda b, s: (b, jnp.maximum(s * TH - 1, 0), 0, 0)),
            pl.BlockSpec((1, 1, W, Cin),
                         lambda b, s: (b, jnp.minimum((s + 1) * TH, Hp - 1), 0, 0)),
            pl.BlockSpec((9 * Cin, Cout), lambda b, s: (0, 0)),
        ],
        out_specs=pl.BlockSpec((1, TH, W, Cout), lambda b, s: (b, s, 0, 0)),
        compiler_params=pltpu.CompilerParams(
            dimension_semantics=("parallel", "parallel"),
            vmem_limit_bytes=int(min(vmem_cap * 3 // 4, 96 * 1024 * 1024))),
    )(x, x, x, w)

    if Hp != H:
        y = y[:, :H]

    # PixelShuffle(2) + NHWC->NCHW: pure layout, one fused XLA transpose.
    #   out[b, c, 2h+i, 2w+j] = conv[b, h, w, c*4 + 2*i + j]
    # TODO(synk): fold this interleave into the kernel's store (lane-dense
    # (Cq, 2*TH, 2*W) strip output) to save one HBM pass over the conv output.
    y = y.reshape(B, H, W, Cq, 2, 2)
    y = jnp.transpose(y, (0, 3, 1, 4, 2, 5))
    return y.reshape(B, Cq, 2 * H, 2 * W)


# ----------------------------------------------------------------------------
# Pure-numpy reference (float64) for a correctness check.
# ----------------------------------------------------------------------------
def _reference_upsample(x_nchw, w_oihw):
    x = np.asarray(x_nchw, np.float64)
    w = np.asarray(w_oihw, np.float64)
    B, Cin, H, W = x.shape
    Cout = w.shape[0]
    Cq = Cout // 4
    xp = np.pad(x, ((0, 0), (0, 0), (1, 1), (1, 1)))
    y = np.zeros((B, Cout, H, W), np.float64)
    for di in range(3):
        for dj in range(3):
            y += np.einsum('bchw,oc->bohw',
                           xp[:, :, di:di + H, dj:dj + W], w[:, :, di, dj])
    y = y.reshape(B, Cq, 2, 2, H, W).transpose(0, 1, 4, 2, 5, 3)
    return y.reshape(B, Cq, 2 * H, 2 * W)


if __name__ == "__main__":
    key = jax.random.PRNGKey(0)
    kx, kw = jax.random.split(key)
    B, n_feat, H, W = 2, 4, 16, 16
    x = jax.random.normal(kx, (B, n_feat, H, W), jnp.float32)      # NCHW input
    w = 0.2 * jax.random.normal(kw, (2 * n_feat, n_feat, 3, 3), jnp.float32)

    ref = _reference_upsample(x, w)

    # Default (single strip), multi-strip, and a strip size that does NOT
    # divide H (exercises the wrapper-side row padding path).
    out = jax.block_until_ready(upsample_forward(x, w))
    out_strips = jax.block_until_ready(upsample_forward(x, w, strip_rows=4))
    out_padded = jax.block_until_ready(upsample_forward(x, w, strip_rows=5))

    assert out.shape == (B, n_feat // 2, 2 * H, 2 * W)
    assert np.allclose(np.asarray(out), ref, rtol=1e-2, atol=1e-2)
    assert np.allclose(np.asarray(out_strips), ref, rtol=1e-2, atol=1e-2)
    assert np.allclose(np.asarray(out_padded), ref, rtol=1e-2, atol=1e-2)
    assert bool(jnp.all(jnp.isfinite(out)))
    print("KERNEL_OK")
</pallas_src>

<mosaic_0001>
module attributes {stable_mosaic.version = 11 : i64} {
  func.func @_conv3x3_strip_kernel(%arg0: i32, %arg1: i32, %arg2: memref<1x16x16x4xf32, #tpu.memory_space<vmem>>, %arg3: memref<1x1x16x4xf32, #tpu.memory_space<vmem>>, %arg4: memref<1x1x16x4xf32, #tpu.memory_space<vmem>>, %arg5: memref<36x8xf32, #tpu.memory_space<vmem>>, %arg6: memref<1x16x16x8xf32, #tpu.memory_space<vmem>>) attributes {dimension_semantics = [#tpu.dimension_semantics<parallel>, #tpu.dimension_semantics<parallel>], iteration_bounds = array<i64: 2, 1>, scalar_prefetch = 0 : i64, scratch_operands = 0 : i64, tpu.core_type = #tpu.core_type<tc>, window_params = [{transform_indices = @transform_0, window_bounds = array<i64: 1, 16, 16, 4>}, {transform_indices = @transform_1, window_bounds = array<i64: 1, 1, 16, 4>}, {transform_indices = @transform_2, window_bounds = array<i64: 1, 1, 16, 4>}, {pipeline_mode = #tpu.pipeline_mode<synchronous>, transform_indices = @transform_3, window_bounds = array<i64: 36, 8>}, {transform_indices = @transform_4, window_bounds = array<i64: 1, 16, 16, 8>}]} {
    %cst = arith.constant 0.000000e+00 : f32
    %0 = vector.broadcast %cst : f32 to vector<1x16x4xf32>
    %c0_i32 = arith.constant 0 : i32
    %1 = arith.cmpi eq, %arg1, %c0_i32 : i32
    %c0 = arith.constant 0 : index
    %c0_0 = arith.constant 0 : index
    %c0_1 = arith.constant 0 : index
    %c0_2 = arith.constant 0 : index
    %2 = vector.load %arg3[%c0, %c0_0, %c0_1, %c0_2] : memref<1x1x16x4xf32, #tpu.memory_space<vmem>>, vector<1x1x16x4xf32>
    %3 = vector.shape_cast %2 : vector<1x1x16x4xf32> to vector<1x16x4xf32>
    %4 = arith.select %1, %0, %3 : vector<1x16x4xf32>
    %c0_i32_3 = arith.constant 0 : i32
    %5 = arith.cmpi eq, %arg1, %c0_i32_3 : i32
    %c0_4 = arith.constant 0 : index
    %c0_5 = arith.constant 0 : index
    %c0_6 = arith.constant 0 : index
    %c0_7 = arith.constant 0 : index
    %6 = vector.load %arg4[%c0_4, %c0_5, %c0_6, %c0_7] : memref<1x1x16x4xf32, #tpu.memory_space<vmem>>, vector<1x1x16x4xf32>
    %7 = vector.shape_cast %6 : vector<1x1x16x4xf32> to vector<1x16x4xf32>
    %8 = arith.select %5, %0, %7 : vector<1x16x4xf32>
    %c0_8 = arith.constant 0 : index
    %c0_9 = arith.constant 0 : index
    %c0_10 = arith.constant 0 : index
    %c0_11 = arith.constant 0 : index
    %9 = vector.load %arg2[%c0_8, %c0_9, %c0_10, %c0_11] : memref<1x16x16x4xf32, #tpu.memory_space<vmem>>, vector<1x16x16x4xf32>
    %10 = vector.shape_cast %9 : vector<1x16x16x4xf32> to vector<16x16x4xf32>
    %11 = tpu.concatenate %4, %10, %8 in 0 : vector<1x16x4xf32>, vector<16x16x4xf32>, vector<1x16x4xf32> -> vector<18x16x4xf32>
    %cst_12 = arith.constant 0.000000e+00 : f32
    %12 = vector.broadcast %cst_12 : f32 to vector<18x1x4xf32>
    %13 = vector.extract_strided_slice %11 {offsets = [0, 0, 0], sizes = [18, 15, 4], strides = [1, 1, 1]} : vector<18x16x4xf32> to vector<18x15x4xf32>
    %14 = tpu.concatenate %12, %13 in 1 : vector<18x1x4xf32>, vector<18x15x4xf32> -> vector<18x16x4xf32>
    %15 = vector.extract_strided_slice %11 {offsets = [0, 1, 0], sizes = [18, 15, 4], strides = [1, 1, 1]} : vector<18x16x4xf32> to vector<18x15x4xf32>
    %16 = tpu.concatenate %15, %12 in 1 : vector<18x15x4xf32>, vector<18x1x4xf32> -> vector<18x16x4xf32>
    %17 = vector.extract_strided_slice %14 {offsets = [0, 0, 0], sizes = [16, 16, 4], strides = [1, 1, 1]} : vector<18x16x4xf32> to vector<16x16x4xf32>
    %18 = vector.extract_strided_slice %11 {offsets = [0, 0, 0], sizes = [16, 16, 4], strides = [1, 1, 1]} : vector<18x16x4xf32> to vector<16x16x4xf32>
    %19 = vector.extract_strided_slice %16 {offsets = [0, 0, 0], sizes = [16, 16, 4], strides = [1, 1, 1]} : vector<18x16x4xf32> to vector<16x16x4xf32>
    %20 = vector.extract_strided_slice %14 {offsets = [1, 0, 0], sizes = [16, 16, 4], strides = [1, 1, 1]} : vector<18x16x4xf32> to vector<16x16x4xf32>
    %21 = vector.extract_strided_slice %11 {offsets = [1, 0, 0], sizes = [16, 16, 4], strides = [1, 1, 1]} : vector<18x16x4xf32> to vector<16x16x4xf32>
    %22 = vector.extract_strided_slice %16 {offsets = [1, 0, 0], sizes = [16, 16, 4], strides = [1, 1, 1]} : vector<18x16x4xf32> to vector<16x16x4xf32>
    %23 = vector.extract_strided_slice %14 {offsets = [2, 0, 0], sizes = [16, 16, 4], strides = [1, 1, 1]} : vector<18x16x4xf32> to vector<16x16x4xf32>
    %24 = vector.extract_strided_slice %11 {offsets = [2, 0, 0], sizes = [16, 16, 4], strides = [1, 1, 1]} : vector<18x16x4xf32> to vector<16x16x4xf32>
    %25 = vector.extract_strided_slice %16 {offsets = [2, 0, 0], sizes = [16, 16, 4], strides = [1, 1, 1]} : vector<18x16x4xf32> to vector<16x16x4xf32>
    %26 = tpu.concatenate %17, %18, %19, %20, %21, %22, %23, %24, %25 in 2 : vector<16x16x4xf32>, vector<16x16x4xf32>, vector<16x16x4xf32>, vector<16x16x4xf32>, vector<16x16x4xf32>, vector<16x16x4xf32>, vector<16x16x4xf32>, vector<16x16x4xf32>, vector<16x16x4xf32> -> vector<16x16x36xf32>
    %27 = vector.shape_cast %26 : vector<16x16x36xf32> to vector<256x36xf32>
    %c0_13 = arith.constant 0 : index
    %c0_14 = arith.constant 0 : index
    %28 = vector.load %arg5[%c0_13, %c0_14] : memref<36x8xf32, #tpu.memory_space<vmem>>, vector<36x8xf32>
    %cst_15 = arith.constant dense<0.000000e+00> : vector<256x8xf32>
    %29 = tpu.matmul %27, %28, %cst_15 {dimension_numbers = #tpu.dot_dimension_numbers<[1], [0], [0], [1], [0, 0, 1, 1], [], []>} : vector<256x36xf32>, vector<36x8xf32>, vector<256x8xf32> -> vector<256x8xf32>
    %30 = vector.shape_cast %29 : vector<256x8xf32> to vector<16x16x8xf32>
    %c0_16 = arith.constant 0 : index
    %c0_17 = arith.constant 0 : index
    %c0_18 = arith.constant 0 : index
    %c0_19 = arith.constant 0 : index
    %31 = vector.load %arg6[%c0_16, %c0_17, %c0_18, %c0_19] : memref<1x16x16x8xf32, #tpu.memory_space<vmem>>, vector<1x16x16x8xf32>
    %32 = vector.shape_cast %31 : vector<1x16x16x8xf32> to vector<16x16x8xf32>
    %33 = vector.shape_cast %30 : vector<16x16x8xf32> to vector<1x16x16x8xf32>
    tpu.vector_store %arg6[%c0_16, %c0_17, %c0_18, %c0_19], %33 {strides = array<i32>} : memref<1x16x16x8xf32, #tpu.memory_space<vmem>>, vector<1x16x16x8xf32>,
    return
  }
  func.func @transform_0(%arg0: i32, %arg1: i32) -> (i32, i32, i32, i32) {
    %c0_i32 = arith.constant 0 : i32
    %c0_i32_0 = arith.constant 0 : i32
    %c0_i32_1 = arith.constant 0 : i32
    return %arg0, %arg1, %c0_i32, %c0_i32_0 : i32, i32, i32, i32
  }
  func.func @transform_1(%arg0: i32, %arg1: i32) -> (i32, i32, i32, i32) {
    %c16_i32 = arith.constant 16 : i32
    %0 = arith.muli %arg1, %c16_i32 : i32
    %c1_i32 = arith.constant 1 : i32
    %1 = arith.subi %0, %c1_i32 : i32
    %c0_i32 = arith.constant 0 : i32
    %2 = arith.maxsi %1, %c0_i32 : i32
    %c0_i32_0 = arith.constant 0 : i32
    %c0_i32_1 = arith.constant 0 : i32
    %c0_i32_2 = arith.constant 0 : i32
    return %arg0, %2, %c0_i32_0, %c0_i32_1 : i32, i32, i32, i32
  }
  func.func @transform_2(%arg0: i32, %arg1: i32) -> (i32, i32, i32, i32) {
    %c1_i32 = arith.constant 1 : i32
    %0 = arith.addi %arg1, %c1_i32 : i32
    %c16_i32 = arith.constant 16 : i32
    %1 = arith.muli %0, %c16_i32 : i32
    %c15_i32 = arith.constant 15 : i32
    %2 = arith.minsi %1, %c15_i32 : i32
    %c0_i32 = arith.constant 0 : i32
    %c0_i32_0 = arith.constant 0 : i32
    %c0_i32_1 = arith.constant 0 : i32
    return %arg0, %2, %c0_i32, %c0_i32_0 : i32, i32, i32, i32
  }
  func.func @transform_3(%arg0: i32, %arg1: i32) -> (i32, i32) {
    %c0_i32 = arith.constant 0 : i32
    %c0_i32_0 = arith.constant 0 : i32
    %c0_i32_1 = arith.constant 0 : i32
    return %c0_i32, %c0_i32_0 : i32, i32
  }
  func.func @transform_4(%arg0: i32, %arg1: i32) -> (i32, i32, i32, i32) {
    %c0_i32 = arith.constant 0 : i32
    %c0_i32_0 = arith.constant 0 : i32
    %c0_i32_1 = arith.constant 0 : i32
    return %arg0, %arg1, %c0_i32, %c0_i32_0 : i32, i32, i32, i32
  }
}

</mosaic_0001>

<llo_original>
// kernel: upsample_forward.1
$region0: #{upsample_forward.1}
  #allocation0 [shape = 'u32[]', space=smem, size = 0x4, offset = 0x4, fixed_abs, tag = 'smem constant byte address 0x4 - core index']
  #allocation1 [shape = 'u32[144,128]{1,0:T(1,128)}', space=vmem, size = 0x12000, scoped, tag = 'internal scratch']
  %s0 = inlined_call_operand.vmem [shape: f32[2,16,16,4], index: 0, kind: input, shape index: {}, may-alias: {0,1,2}]
  %s1 = inlined_call_operand.vmem [shape: f32[2,16,16,4], index: 1, kind: input, shape index: {}, may-alias: {0,1,2}]
  %s2 = inlined_call_operand.vmem [shape: f32[2,16,16,4], index: 2, kind: input, shape index: {}, may-alias: {0,1,2}]
  %s3 = inlined_call_operand.vmem [shape: f32[36,8], index: 3, kind: input, shape index: {}]
  %s4 = inlined_call_operand.vmem [shape: f32[2,16,16,8], index: 4, kind: output, shape index: {}]
  %s5 = sld [smem:[#allocation0]]
  $region49: #{upsample_forward.1} parent=0
    _
  %s7 = ssub.s32 1, %s5
  %s8 = scalar_select 0, %s7, %s5
  loop: start=0, step=1, limit=4
  $region2: #{upsample_forward.1} parent=0 // loop_pre_header
    _
  $region3: #{upsample_forward.1} parent=0 // loop_header
    %s10 = sphi 0, %s14
    %p11 = scmp.ge.s32.totalorder %s10, 4
    %s17 = sphi 0, %s29
    %s18 = sphi 0, %s25
    %s19 = sphi 0, %s17
    %s20 = sphi 0, %s18
    %s21 = sphi 0, %s19
    %s22 = sphi 0, %s20
    %s34 = sphi 0, %s36
    %s37 = sphi 0, %s34
    %s38 = sphi 0, %s37
    %s54 = sphi 0, %s38
    %s70 = sphi 0, %s72
    %s73 = sphi 0, %s70
    %s74 = sphi 0, %s73
    %s90 = sphi 0, %s74
    %s106 = sphi 0, %s108
    %s109 = sphi 0, %s106
    %s110 = sphi 0, %s109
    %s126 = sphi 0, %s110
    %s130 = sphi 0, %s130
    %s132 = sphi 0, %s130
    %s133 = sphi 0, %s132
    %s147 = sphi 0, %s133
    %s155 = sphi 0, %s157
    %s158 = sphi 0, %s155
    %s159 = sphi 0, %s158
    %s175 = sphi 0, %s159
  $region4: #{upsample_forward.1} parent=0 // loop_header_branch
    %13 = sbr.rel (%p11) target = $region8
  $region5: #{upsample_forward.1} parent=0 // loop_body
    %s15 = ssub.s32 %s10, 1
    %s16 = ssub.s32 %s10, 2
    %s23 = sadd.s32 1, %s18
    %p24 = scmp.ge.s32.totalorder %s23, 1
    %s25 = scalar_select %p24, 0, %s23
    %s26 = sadd.s32 1, %s17
    %s27 = scalar_select %p24, %s26, %s17
    %p28 = scmp.ge.s32.totalorder %s27, 2
    %s29 = scalar_select %p28, 0, %s27
    %s30 = ssub.s32 %s17, %s29
    %s31 = ssub.s32 %s18, %s25
    %s32 = sor.u32 %s30, %s31
    %p33 = scmp.eq.s32.totalorder %s32, 0
    %s35 = sadd.s32 %s34, 1
    %s36 = scalar_select %p33, %s34, %s35
    %p39 = pneg %p33
    %p40 = scmp.eq.s32.totalorder %s10, 1
    %p41 = por %p39, %p40
    %p42 = scmp.ne.s32.totalorder %s34, %s37
    %p43 = scmp.eq.s32.totalorder %s10, 0
    %p44 = por %p42, %p43
    %p45 = scmp.ne.s32.totalorder %s34, %s37
    %p46 = scmp.eq.s32.totalorder %s15, 1
    %p47 = por %p45, %p46
    %p48 = scmp.ne.s32.totalorder %s37, %s38
    %p49 = scmp.eq.s32.totalorder %s15, 0
    %p50 = por %p48, %p49
    %p51 = scmp.ne.s32.totalorder %s37, %s38
    %p52 = scmp.eq.s32.totalorder %s16, 1
    %p53 = por %p51, %p52
    %p55 = scmp.ne.s32.totalorder %s38, %s54
    %p56 = scmp.eq.s32.totalorder %s16, 0
    %p57 = por %p55, %p56
    %s58 = smul.u32 %s18, 16
    %s59 = ssub.s32 %s58, 1
    %p60 = scmp.gt.s32.totalorder %s59, 0
    %s61 = scalar_select %p60, %s59, 0
    %s62 = smul.u32 %s25, 16
    %s63 = ssub.s32 %s62, 1
    %p64 = scmp.gt.s32.totalorder %s63, 0
    %s65 = scalar_select %p64, %s63, 0
    %s66 = ssub.s32 %s17, %s29
    %s67 = ssub.s32 %s61, %s65
    %s68 = sor.u32 %s66, %s67
    %p69 = scmp.eq.s32.totalorder %s68, 0
    %s71 = sadd.s32 %s70, 1
    %s72 = scalar_select %p69, %s70, %s71
    %p75 = pneg %p69
    %p76 = scmp.eq.s32.totalorder %s10, 1
    %p77 = por %p75, %p76
    %p78 = scmp.ne.s32.totalorder %s70, %s73
    %p79 = scmp.eq.s32.totalorder %s10, 0
    %p80 = por %p78, %p79
    %p81 = scmp.ne.s32.totalorder %s70, %s73
    %p82 = scmp.eq.s32.totalorder %s15, 1
    %p83 = por %p81, %p82
    %p84 = scmp.ne.s32.totalorder %s73, %s74
    %p85 = scmp.eq.s32.totalorder %s15, 0
    %p86 = por %p84, %p85
    %p87 = scmp.ne.s32.totalorder %s73, %s74
    %p88 = scmp.eq.s32.totalorder %s16, 1
    %p89 = por %p87, %p88
    %p91 = scmp.ne.s32.totalorder %s74, %s90
    %p92 = scmp.eq.s32.totalorder %s16, 0
    %p93 = por %p91, %p92
    %s94 = sadd.s32 %s18, 1
    %s95 = smul.u32 %s94, 16
    %p96 = scmp.lt.s32.totalorder %s95, 15
    %s97 = scalar_select %p96, %s95, 15
    %s98 = sadd.s32 %s25, 1
    %s99 = smul.u32 %s98, 16
    %p100 = scmp.lt.s32.totalorder %s99, 15
    %s101 = scalar_select %p100, %s99, 15
    %s102 = ssub.s32 %s17, %s29
    %s103 = ssub.s32 %s97, %s101
    %s104 = sor.u32 %s102, %s103
    %p105 = scmp.eq.s32.totalorder %s104, 0
    %s107 = sadd.s32 %s106, 1
    %s108 = scalar_select %p105, %s106, %s107
    %p111 = pneg %p105
    %p112 = scmp.eq.s32.totalorder %s10, 1
    %p113 = por %p111, %p112
    %p114 = scmp.ne.s32.totalorder %s106, %s109
    %p115 = scmp.eq.s32.totalorder %s10, 0
    %p116 = por %p114, %p115
    %p117 = scmp.ne.s32.totalorder %s106, %s109
    %p118 = scmp.eq.s32.totalorder %s15, 1
    %p119 = por %p117, %p118
    %p120 = scmp.ne.s32.totalorder %s109, %s110
    %p121 = scmp.eq.s32.totalorder %s15, 0
    %p122 = por %p120, %p121
    %p123 = scmp.ne.s32.totalorder %s109, %s110
    %p124 = scmp.eq.s32.totalorder %s16, 1
    %p125 = por %p123, %p124
    %p127 = scmp.ne.s32.totalorder %s110, %s126
    %p128 = scmp.eq.s32.totalorder %s16, 0
    %p129 = por %p127, %p128
    %s131 = sadd.s32 %s130, 1
    %p134 = scmp.eq.s32.totalorder %s10, 1
    %p135 = scmp.ne.s32.totalorder %s130, %s132
    %p136 = scmp.eq.s32.totalorder %s10, 0
    %p137 = por %p135, %p136
    %p138 = scmp.ne.s32.totalorder %s130, %s132
    %p139 = scmp.eq.s32.totalorder %s15, 1
    %p140 = por %p138, %p139
    %p141 = scmp.ne.s32.totalorder %s132, %s133
    %p142 = scmp.eq.s32.totalorder %s15, 0
    %p143 = por %p141, %p142
    %p144 = scmp.ne.s32.totalorder %s132, %s133
    %p145 = scmp.eq.s32.totalorder %s16, 1
    %p146 = por %p144, %p145
    %p148 = scmp.ne.s32.totalorder %s133, %s147
    %p149 = scmp.eq.s32.totalorder %s16, 0
    %p150 = por %p148, %p149
    %s151 = ssub.s32 %s17, %s29
    %s152 = ssub.s32 %s18, %s25
    %s153 = sor.u32 %s151, %s152
    %p154 = scmp.eq.s32.totalorder %s153, 0
    %s156 = sadd.s32 %s155, 1
    %s157 = scalar_select %p154, %s155, %s156
    %p160 = pneg %p154
    %p161 = scmp.eq.s32.totalorder %s10, 1
    %p162 = por %p160, %p161
    %p163 = scmp.ne.s32.totalorder %s155, %s158
    %p164 = scmp.eq.s32.totalorder %s10, 0
    %p165 = por %p163, %p164
    %p166 = scmp.ne.s32.totalorder %s155, %s158
    %p167 = scmp.eq.s32.totalorder %s15, 1
    %p168 = por %p166, %p167
    %p169 = scmp.ne.s32.totalorder %s158, %s159
    %p170 = scmp.eq.s32.totalorder %s15, 0
    %p171 = por %p169, %p170
    %p172 = scmp.ne.s32.totalorder %s158, %s159
    %p173 = scmp.eq.s32.totalorder %s16, 1
    %p174 = por %p172, %p173
    %p176 = scmp.ne.s32.totalorder %s159, %s175
    %p177 = scmp.eq.s32.totalorder %s16, 0
    %p178 = por %p176, %p177
    %p179 = scmp.le.s32.totalorder 1, %s10
    %p180 = scmp.lt.s32.totalorder %s10, 3
    %p181 = pnand %p179, %p180
    %p182 = pneg %p181
    // Predicated region
    $region9: #{upsample_forward.1} parent=5 // pred_check
      _
    $region10: #{upsample_forward.1} parent=5 // pred_check_branch
      %184 = sbr.rel (%p181) target = $region12
    $region11: #{upsample_forward.1} parent=5 // pred_region
      %s185 = ssub.s32 %s10, 1
      // Predicated region
      $region13: #{upsample_forward.1} parent=11 // pred_check
        %p186 = pneg %p143
      $region14: #{upsample_forward.1} parent=11 // pred_check_branch
        %188 = sbr.rel (%p186) target = $region16
      $region15: #{upsample_forward.1} parent=11 // pred_region
        _
      $region16: #{upsample_forward.1} parent=11 // pred_fallthru
        _
    $region12: #{upsample_forward.1} parent=5 // pred_fallthru
      _
    %p189 = scmp.lt.s32.totalorder %s10, 2
    // Predicated region
    $region17: #{upsample_forward.1} parent=5 // pred_check
      %p190 = pneg %p189
    $region18: #{upsample_forward.1} parent=5 // pred_check_branch
      %192 = sbr.rel (%p190) target = $region20
    $region19: #{upsample_forward.1} parent=5 // pred_region
      // Predicated region
      $region21: #{upsample_forward.1} parent=19 // pred_check
        %p193 = pneg %p44
      $region22: #{upsample_forward.1} parent=19 // pred_check_branch
        %195 = sbr.rel (%p193) target = $region24
      $region23: #{upsample_forward.1} parent=19 // pred_region
        %s196 = smul.u32 16, %s18
        %p197 = scmp.lt.s32.totalorder %s17, 1
        %s198 = scalar_select %p197, %s17, 1
        %p199 = scmp.lt.s32.totalorder %s196, 15
        %s200 = scalar_select %p199, %s196, 15
        %s201 = smul.addr %s200, 2
        %s202 = smul.addr %s198, 32
        %s203 = sadd.s32 %s201, %s202
        %s204 = smul.addr %s203, 8
        %s205 = scalar_lea.vmem %s0, %s204
        %s206 = smul.u32 16, %s18
      $region24: #{upsample_forward.1} parent=19 // pred_fallthru
        _
      // Predicated region
      $region25: #{upsample_forward.1} parent=19 // pred_check
        %p207 = pneg %p80
      $region26: #{upsample_forward.1} parent=19 // pred_check_branch
        %209 = sbr.rel (%p207) target = $region28
      $region27: #{upsample_forward.1} parent=19 // pred_region
        %s210 = smul.u32 %s18, 16
        %s211 = ssub.s32 %s210, 1
        %p212 = scmp.gt.s32.totalorder %s211, 0
        %s213 = scalar_select %p212, %s211, 0
        %p214 = scmp.lt.s32.totalorder %s17, 1
        %s215 = scalar_select %p214, %s17, 1
        %p216 = scmp.lt.s32.totalorder %s213, 15
        %s217 = scalar_select %p216, %s213, 15
        %s218 = smul.addr %s217, 2
        %s219 = smul.addr %s215, 32
        %s220 = sadd.s32 %s218, %s219
        %s221 = smul.addr %s220, 8
        %s222 = scalar_lea.vmem %s1, %s221
        %s223 = smul.u32 %s18, 16
        %s224 = ssub.s32 %s223, 1
        %p225 = scmp.gt.s32.totalorder %s224, 0
        %s226 = scalar_select %p225, %s224, 0
      $region28: #{upsample_forward.1} parent=19 // pred_fallthru
        _
      // Predicated region
      $region29: #{upsample_forward.1} parent=19 // pred_check
        %p227 = pneg %p116
      $region30: #{upsample_forward.1} parent=19 // pred_check_branch
        %229 = sbr.rel (%p227) target = $region32
      $region31: #{upsample_forward.1} parent=19 // pred_region
        %s230 = sadd.s32 %s18, 1
        %s231 = smul.u32 %s230, 16
        %p232 = scmp.lt.s32.totalorder %s231, 15
        %s233 = scalar_select %p232, %s231, 15
        %p234 = scmp.lt.s32.totalorder %s17, 1
        %s235 = scalar_select %p234, %s17, 1
        %p236 = scmp.lt.s32.totalorder %s233, 15
        %s237 = scalar_select %p236, %s233, 15
        %s238 = smul.addr %s237, 2
        %s239 = smul.addr %s235, 32
        %s240 = sadd.s32 %s238, %s239
        %s241 = smul.addr %s240, 8
        %s242 = scalar_lea.vmem %s2, %s241
        %s243 = sadd.s32 %s18, 1
        %s244 = smul.u32 %s243, 16
        %p245 = scmp.lt.s32.totalorder %s244, 15
        %s246 = scalar_select %p245, %s244, 15
      $region32: #{upsample_forward.1} parent=19 // pred_fallthru
        _
    $region20: #{upsample_forward.1} parent=5 // pred_fallthru
      _
    %p247 = scmp.le.s32.totalorder 1, %s10
    %p248 = scmp.lt.s32.totalorder %s10, 3
    %p249 = pnand %p247, %p248
    %p250 = pneg %p249
    // Predicated region
    $region33: #{upsample_forward.1} parent=5 // pred_check
      _
    $region34: #{upsample_forward.1} parent=5 // pred_check_branch
      %252 = sbr.rel (%p249) target = $region36
    $region35: #{upsample_forward.1} parent=5 // pred_region
      %s253 = ssub.s32 %s10, 1
      %s254 = smul.u32 16, %s20
      %p255 = scmp.lt.s32.totalorder %s19, 1
      %s256 = scalar_select %p255, %s19, 1
      %p257 = scmp.lt.s32.totalorder %s254, 15
      %s258 = scalar_select %p257, %s254, 15
      %s259 = smul.addr %s258, 2
      %s260 = smul.addr %s256, 32
      %s261 = sadd.s32 %s259, %s260
      %s262 = smul.addr %s261, 8
      %s263 = scalar_lea.vmem %s0, %s262
      %p264 = pneg %p50
      %p265 = pneg %p47
      %s266 = smul.u32 %s20, 16
      %s267 = ssub.s32 %s266, 1
      %p268 = scmp.gt.s32.totalorder %s267, 0
      %s269 = scalar_select %p268, %s267, 0
      %p270 = scmp.lt.s32.totalorder %s19, 1
      %s271 = scalar_select %p270, %s19, 1
      %p272 = scmp.lt.s32.totalorder %s269, 15
      %s273 = scalar_select %p272, %s269, 15
      %s274 = smul.addr %s273, 2
      %s275 = smul.addr %s271, 32
      %s276 = sadd.s32 %s274, %s275
      %s277 = smul.addr %s276, 8
      %s278 = scalar_lea.vmem %s1, %s277
      %p279 = pneg %p86
      %p280 = pneg %p83
      %s281 = sadd.s32 %s20, 1
      %s282 = smul.u32 %s281, 16
      %p283 = scmp.lt.s32.totalorder %s282, 15
      %s284 = scalar_select %p283, %s282, 15
      %p285 = scmp.lt.s32.totalorder %s19, 1
      %s286 = scalar_select %p285, %s19, 1
      %p287 = scmp.lt.s32.totalorder %s284, 15
      %s288 = scalar_select %p287, %s284, 15
      %s289 = smul.addr %s288, 2
      %s290 = smul.addr %s286, 32
      %s291 = sadd.s32 %s289, %s290
      %s292 = smul.addr %s291, 8
      %s293 = scalar_lea.vmem %s2, %s292
      %p294 = pneg %p122
      %p295 = pneg %p119
      %p296 = pneg %p143
      %p297 = pneg %p140
      %p298 = pneg %p171
      %p299 = pneg %p168
      %s300 = smul.u32 16, %s20
      %p301 = scmp.lt.s32.totalorder %s19, 1
      %s302 = scalar_select %p301, %s19, 1
      %p303 = scmp.lt.s32.totalorder %s300, 15
      %s304 = scalar_select %p303, %s300, 15
      %s305 = smul.addr %s304, 2
      %s306 = smul.addr %s302, 32
      %s307 = sadd.s32 %s305, %s306
      %s308 = smul.addr %s307, 8
      %s309 = scalar_lea.vmem %s4, %s308
      %s310 = smul.u32 16, %s20
      %p311 = scmp.lt.s32.totalorder %s19, 1
      %s312 = scalar_select %p311, %s19, 1
      %p313 = scmp.lt.s32.totalorder %s310, 15
      %s314 = scalar_select %p313, %s310, 15
      %s315 = smul.addr %s314, 2
      %s316 = smul.addr %s312, 32
      %s317 = sadd.s32 %s315, %s316
      %s318 = smul.addr %s317, 8
      %s319 = scalar_lea.vmem %s0, %s318
      %s320 = smul.u32 16, %s20
      %s321 = smul.u32 %s20, 16
      %s322 = ssub.s32 %s321, 1
      %p323 = scmp.gt.s32.totalorder %s322, 0
      %s324 = scalar_select %p323, %s322, 0
      %p325 = scmp.lt.s32.totalorder %s19, 1
      %s326 = scalar_select %p325, %s19, 1
      %p327 = scmp.lt.s32.totalorder %s324, 15
      %s328 = scalar_select %p327, %s324, 15
      %s329 = smul.addr %s328, 2
      %s330 = smul.addr %s326, 32
      %s331 = sadd.s32 %s329, %s330
      %s332 = smul.addr %s331, 8
      %s333 = scalar_lea.vmem %s1, %s332
      %s334 = smul.u32 %s20, 16
      %s335 = ssub.s32 %s334, 1
      %p336 = scmp.gt.s32.totalorder %s335, 0
      %s337 = scalar_select %p336, %s335, 0
      %s338 = sadd.s32 %s20, 1
      %s339 = smul.u32 %s338, 16
      %p340 = scmp.lt.s32.totalorder %s339, 15
      %s341 = scalar_select %p340, %s339, 15
      %p342 = scmp.lt.s32.totalorder %s19, 1
      %s343 = scalar_select %p342, %s19, 1
      %p344 = scmp.lt.s32.totalorder %s341, 15
      %s345 = scalar_select %p344, %s341, 15
      %s346 = smul.addr %s345, 2
      %s347 = smul.addr %s343, 32
      %s348 = sadd.s32 %s346, %s347
      %s349 = smul.addr %s348, 8
      %s350 = scalar_lea.vmem %s2, %s349
      %s351 = sadd.s32 %s20, 1
      %s352 = smul.u32 %s351, 16
      %p353 = scmp.lt.s32.totalorder %s352, 15
      %s354 = scalar_select %p353, %s352, 15
      %s355 = smul.u32 16, %s20
      %p356 = scmp.lt.s32.totalorder %s19, 1
      %s357 = scalar_select %p356, %s19, 1
      %p358 = scmp.lt.s32.totalorder %s355, 15
      %s359 = scalar_select %p358, %s355, 15
      %s360 = smul.addr %s359, 2
      %s361 = smul.addr %s357, 32
      %s362 = sadd.s32 %s360, %s361
      %s363 = smul.addr %s362, 8
      %s364 = scalar_lea.vmem %s4, %s363
      %s365 = smul.u32 16, %s20
      %p366 = scmp.eq.s32.totalorder %s20, 0
      %v367 = vld [vmem:[%s333] sm:$0xff]
      %v368 = vld [vmem:[%s333 + $0x8] sm:$0xff]
      %s369 = scalar_select %p366, 1, 0
      %v370 = vstv %s369
      %vm371 = vcmp.eq.s32.totalorder %v370, 1
      %v372 = vsel %vm371, 0.0, %v367
      %v373 = vsel %vm371, 0.0, %v368
      %v374 = vld [vmem:[%s350] sm:$0xff]
      %v375 = vld [vmem:[%s350 + $0x8] sm:$0xff]
      %v376 = vsel %vm371, 0.0, %v374
      %v377 = vsel %vm371, 0.0, %v375
      %v378 = vld [vmem:[%s319] sm:$0xff]
      %v379 = vld [vmem:[%s319 + $0x8] sm:$0xff]
      %v380 = vld [vmem:[%s319 + $0x10] sm:$0xff]
      %v381 = vld [vmem:[%s319 + $0x18] sm:$0xff]
      %v382 = vld [vmem:[%s319 + $0x20] sm:$0xff]
      %v383 = vld [vmem:[%s319 + $0x28] sm:$0xff]
      %v384 = vld [vmem:[%s319 + $0x30] sm:$0xff]
      %v385 = vld [vmem:[%s319 + $0x38] sm:$0xff]
      %v386 = vld [vmem:[%s319 + $0x40] sm:$0xff]
      %v387 = vld [vmem:[%s319 + $0x48] sm:$0xff]
      %v388 = vld [vmem:[%s319 + $0x50] sm:$0xff]
      %v389 = vld [vmem:[%s319 + $0x58] sm:$0xff]
      %v390 = vld [vmem:[%s319 + $0x60] sm:$0xff]
      %v391 = vld [vmem:[%s319 + $0x68] sm:$0xff]
      %v392 = vld [vmem:[%s319 + $0x70] sm:$0xff]
      %v393 = vld [vmem:[%s319 + $0x78] sm:$0xff]
      %v394 = vld [vmem:[%s319 + $0x80] sm:$0xff]
      %v395 = vld [vmem:[%s319 + $0x88] sm:$0xff]
      %v396 = vld [vmem:[%s319 + $0x90] sm:$0xff]
      %v397 = vld [vmem:[%s319 + $0x98] sm:$0xff]
      %v398 = vld [vmem:[%s319 + $0xa0] sm:$0xff]
      %v399 = vld [vmem:[%s319 + $0xa8] sm:$0xff]
      %v400 = vld [vmem:[%s319 + $0xb0] sm:$0xff]
      %v401 = vld [vmem:[%s319 + $0xb8] sm:$0xff]
      %v402 = vld [vmem:[%s319 + $0xc0] sm:$0xff]
      %v403 = vld [vmem:[%s319 + $0xc8] sm:$0xff]
      %v404 = vld [vmem:[%s319 + $0xd0] sm:$0xff]
      %v405 = vld [vmem:[%s319 + $0xd8] sm:$0xff]
      %v406 = vld [vmem:[%s319 + $0xe0] sm:$0xff]
      %v407 = vld [vmem:[%s319 + $0xe8] sm:$0xff]
      %v408 = vld [vmem:[%s319 + $0xf0] sm:$0xff]
      %v409 = vld [vmem:[%s319 + $0xf8] sm:$0xff]
      %vm446 = vcmask 1040384
      %v447 = vrot.slane %v372, 7
      %v448 = vrot.slane %v373, 7
      %v449 = vsel %vm446, %v447, %v448
      %v450 = vrot.slane %v378, 7
      %v451 = vrot.slane %v379, 7
      %v452 = vsel %vm446, %v450, %v451
      %v453 = vrot.slane %v380, 7
      %v454 = vrot.slane %v381, 7
      %v455 = vsel %vm446, %v453, %v454
      %v456 = vrot.slane %v382, 7
      %v457 = vrot.slane %v383, 7
      %v458 = vsel %vm446, %v456, %v457
      %v459 = vrot.slane %v384, 7
      %v460 = vrot.slane %v385, 7
      %v461 = vsel %vm446, %v459, %v460
      %v462 = vrot.slane %v386, 7
      %v463 = vrot.slane %v387, 7
      %v464 = vsel %vm446, %v462, %v463
      %v465 = vrot.slane %v388, 7
      %v466 = vrot.slane %v389, 7
      %v467 = vsel %vm446, %v465, %v466
      %v468 = vrot.slane %v390, 7
      %v469 = vrot.slane %v391, 7
      %v470 = vsel %vm446, %v468, %v469
      %v471 = vrot.slane %v392, 7
      %v472 = vrot.slane %v393, 7
      %v473 = vsel %vm446, %v471, %v472
      %v474 = vrot.slane %v394, 7
      %v475 = vrot.slane %v395, 7
      %v476 = vsel %vm446, %v474, %v475
      %v477 = vrot.slane %v396, 7
      %v478 = vrot.slane %v397, 7
      %v479 = vsel %vm446, %v477, %v478
      %v480 = vrot.slane %v398, 7
      %v481 = vrot.slane %v399, 7
      %v482 = vsel %vm446, %v480, %v481
      %v483 = vrot.slane %v400, 7
      %v484 = vrot.slane %v401, 7
      %v485 = vsel %vm446, %v483, %v484
      %v486 = vrot.slane %v402, 7
      %v487 = vrot.slane %v403, 7
      %v488 = vsel %vm446, %v486, %v487
      %v489 = vrot.slane %v404, 7
      %v490 = vrot.slane %v405, 7
      %v491 = vsel %vm446, %v489, %v490
      %v492 = vrot.slane %v406, 7
      %v493 = vrot.slane %v407, 7
      %v494 = vsel %vm446, %v492, %v493
      %v495 = vrot.slane %v408, 7
      %v496 = vrot.slane %v409, 7
      %v497 = vsel %vm446, %v495, %v496
      %v498 = vrot.slane %v376, 7
      %v499 = vrot.slane %v377, 7
      %v500 = vsel %vm446, %v498, %v499
      %v535 = vsel %vm446, 0.0, %v447
      %v536 = vsel %vm446, 0.0, %v450
      %v537 = vsel %vm446, 0.0, %v453
      %v538 = vsel %vm446, 0.0, %v456
      %v539 = vsel %vm446, 0.0, %v459
      %v540 = vsel %vm446, 0.0, %v462
      %v541 = vsel %vm446, 0.0, %v465
      %v542 = vsel %vm446, 0.0, %v468
      %v543 = vsel %vm446, 0.0, %v471
      %v544 = vsel %vm446, 0.0, %v474
      %v545 = vsel %vm446, 0.0, %v477
      %v546 = vsel %vm446, 0.0, %v480
      %v547 = vsel %vm446, 0.0, %v483
      %v548 = vsel %vm446, 0.0, %v486
      %v549 = vsel %vm446, 0.0, %v489
      %v550 = vsel %vm446, 0.0, %v492
      %v551 = vsel %vm446, 0.0, %v495
      %v552 = vsel %vm446, 0.0, %v498
      %vm553 = vcmask 1046528
      %v554 = vrot.slane %v372, 1
      %v555 = vrot.slane %v373, 1
      %v556 = vsel %vm553, %v554, %v555
      %v557 = vrot.slane %v378, 1
      %v558 = vrot.slane %v379, 1
      %v559 = vsel %vm553, %v557, %v558
      %v560 = vrot.slane %v380, 1
      %v561 = vrot.slane %v381, 1
      %v562 = vsel %vm553, %v560, %v561
      %v563 = vrot.slane %v382, 1
      %v564 = vrot.slane %v383, 1
      %v565 = vsel %vm553, %v563, %v564
      %v566 = vrot.slane %v384, 1
      %v567 = vrot.slane %v385, 1
      %v568 = vsel %vm553, %v566, %v567
      %v569 = vrot.slane %v386, 1
      %v570 = vrot.slane %v387, 1
      %v571 = vsel %vm553, %v569, %v570
      %v572 = vrot.slane %v388, 1
      %v573 = vrot.slane %v389, 1
      %v574 = vsel %vm553, %v572, %v573
      %v575 = vrot.slane %v390, 1
      %v576 = vrot.slane %v391, 1
      %v577 = vsel %vm553, %v575, %v576
      %v578 = vrot.slane %v392, 1
      %v579 = vrot.slane %v393, 1
      %v580 = vsel %vm553, %v578, %v579
      %v581 = vrot.slane %v394, 1
      %v582 = vrot.slane %v395, 1
      %v583 = vsel %vm553, %v581, %v582
      %v584 = vrot.slane %v396, 1
      %v585 = vrot.slane %v397, 1
      %v586 = vsel %vm553, %v584, %v585
      %v587 = vrot.slane %v398, 1
      %v588 = vrot.slane %v399, 1
      %v589 = vsel %vm553, %v587, %v588
      %v590 = vrot.slane %v400, 1
      %v591 = vrot.slane %v401, 1
      %v592 = vsel %vm553, %v590, %v591
      %v593 = vrot.slane %v402, 1
      %v594 = vrot.slane %v403, 1
      %v595 = vsel %vm553, %v593, %v594
      %v596 = vrot.slane %v404, 1
      %v597 = vrot.slane %v405, 1
      %v598 = vsel %vm553, %v596, %v597
      %v599 = vrot.slane %v406, 1
      %v600 = vrot.slane %v407, 1
      %v601 = vsel %vm553, %v599, %v600
      %v602 = vrot.slane %v408, 1
      %v603 = vrot.slane %v409, 1
      %v604 = vsel %vm553, %v602, %v603
      %v605 = vrot.slane %v376, 1
      %v606 = vrot.slane %v377, 1
      %v607 = vsel %vm553, %v605, %v606
      %v626 = vsel %vm553, %v555, 0.0
      %v627 = vsel %vm553, %v558, 0.0
      %v628 = vsel %vm553, %v561, 0.0
      %v629 = vsel %vm553, %v564, 0.0
      %v630 = vsel %vm553, %v567, 0.0
      %v631 = vsel %vm553, %v570, 0.0
      %v632 = vsel %vm553, %v573, 0.0
      %v633 = vsel %vm553, %v576, 0.0
      %v634 = vsel %vm553, %v579, 0.0
      %v635 = vsel %vm553, %v582, 0.0
      %v636 = vsel %vm553, %v585, 0.0
      %v637 = vsel %vm553, %v588, 0.0
      %v638 = vsel %vm553, %v591, 0.0
      %v639 = vsel %vm553, %v594, 0.0
      %v640 = vsel %vm553, %v597, 0.0
      %v641 = vsel %vm553, %v600, 0.0
      %v642 = vsel %vm553, %v603, 0.0
      %v643 = vsel %vm553, %v606, 0.0
      %644 = vrot.lane.b32.xlu0 %v372, 4
      %v645 = vpop.permute.xlu0 %644
      %646 = vrot.lane.b32.xlu0 %v373, 4
      %v647 = vpop.permute.xlu0 %646
      %648 = vrot.lane.b32.xlu0 %v378, 4
      %v649 = vpop.permute.xlu0 %648
      %650 = vrot.lane.b32.xlu0 %v379, 4
      %v651 = vpop.permute.xlu0 %650
      %652 = vrot.lane.b32.xlu0 %v380, 4
      %v653 = vpop.permute.xlu0 %652
      %654 = vrot.lane.b32.xlu0 %v381, 4
      %v655 = vpop.permute.xlu0 %654
      %656 = vrot.lane.b32.xlu0 %v382, 4
      %v657 = vpop.permute.xlu0 %656
      %658 = vrot.lane.b32.xlu0 %v383, 4
      %v659 = vpop.permute.xlu0 %658
      %660 = vrot.lane.b32.xlu0 %v384, 4
      %v661 = vpop.permute.xlu0 %660
      %662 = vrot.lane.b32.xlu0 %v385, 4
      %v663 = vpop.permute.xlu0 %662
      %664 = vrot.lane.b32.xlu0 %v386, 4
      %v665 = vpop.permute.xlu0 %664
      %666 = vrot.lane.b32.xlu0 %v387, 4
      %v667 = vpop.permute.xlu0 %666
      %668 = vrot.lane.b32.xlu0 %v388, 4
      %v669 = vpop.permute.xlu0 %668
      %670 = vrot.lane.b32.xlu0 %v389, 4
      %v671 = vpop.permute.xlu0 %670
      %672 = vrot.lane.b32.xlu0 %v390, 4
      %v673 = vpop.permute.xlu0 %672
      %674 = vrot.lane.b32.xlu0 %v391, 4
      %v675 = vpop.permute.xlu0 %674
      %676 = vrot.lane.b32.xlu0 %v392, 4
      %v677 = vpop.permute.xlu0 %676
      %678 = vrot.lane.b32.xlu0 %v393, 4
      %v679 = vpop.permute.xlu0 %678
      %680 = vrot.lane.b32.xlu0 %v394, 4
      %v681 = vpop.permute.xlu0 %680
      %682 = vrot.lane.b32.xlu0 %v395, 4
      %v683 = vpop.permute.xlu0 %682
      %684 = vrot.lane.b32.xlu0 %v396, 4
      %v685 = vpop.permute.xlu0 %684
      %686 = vrot.lane.b32.xlu0 %v397, 4
      %v687 = vpop.permute.xlu0 %686
      %688 = vrot.lane.b32.xlu0 %v398, 4
      %v689 = vpop.permute.xlu0 %688
      %690 = vrot.lane.b32.xlu0 %v399, 4
      %v691 = vpop.permute.xlu0 %690
      %692 = vrot.lane.b32.xlu0 %v400, 4
      %v693 = vpop.permute.xlu0 %692
      %694 = vrot.lane.b32.xlu0 %v401, 4
      %v695 = vpop.permute.xlu0 %694
      %696 = vrot.lane.b32.xlu0 %v402, 4
      %v697 = vpop.permute.xlu0 %696
      %698 = vrot.lane.b32.xlu0 %v403, 4
      %v699 = vpop.permute.xlu0 %698
      %700 = vrot.lane.b32.xlu0 %v404, 4
      %v701 = vpop.permute.xlu0 %700
      %702 = vrot.lane.b32.xlu0 %v405, 4
      %v703 = vpop.permute.xlu0 %702
      %704 = vrot.lane.b32.xlu0 %v406, 4
      %v705 = vpop.permute.xlu0 %704
      %706 = vrot.lane.b32.xlu0 %v407, 4
      %v707 = vpop.permute.xlu0 %706
      %756 = vrot.lane.b32.xlu0 %v556, 8
      %v757 = vpop.permute.xlu0 %756
      %758 = vrot.lane.b32.xlu0 %v626, 8
      %v759 = vpop.permute.xlu0 %758
      %760 = vrot.lane.b32.xlu0 %v559, 8
      %v761 = vpop.permute.xlu0 %760
      %762 = vrot.lane.b32.xlu0 %v627, 8
      %v763 = vpop.permute.xlu0 %762
      %764 = vrot.lane.b32.xlu0 %v562, 8
      %v765 = vpop.permute.xlu0 %764
      %766 = vrot.lane.b32.xlu0 %v628, 8
      %v767 = vpop.permute.xlu0 %766
      %768 = vrot.lane.b32.xlu0 %v565, 8
      %v769 = vpop.permute.xlu0 %768
      %770 = vrot.lane.b32.xlu0 %v629, 8
      %v771 = vpop.permute.xlu0 %770
      %772 = vrot.lane.b32.xlu0 %v568, 8
      %v773 = vpop.permute.xlu0 %772
      %774 = vrot.lane.b32.xlu0 %v630, 8
      %v775 = vpop.permute.xlu0 %774
      %776 = vrot.lane.b32.xlu0 %v571, 8
      %v777 = vpop.permute.xlu0 %776
      %778 = vrot.lane.b32.xlu0 %v631, 8
      %v779 = vpop.permute.xlu0 %778
      %780 = vrot.lane.b32.xlu0 %v574, 8
      %v781 = vpop.permute.xlu0 %780
      %782 = vrot.lane.b32.xlu0 %v632, 8
      %v783 = vpop.permute.xlu0 %782
      %784 = vrot.lane.b32.xlu0 %v577, 8
      %v785 = vpop.permute.xlu0 %784
      %786 = vrot.lane.b32.xlu0 %v633, 8
      %v787 = vpop.permute.xlu0 %786
      %788 = vrot.lane.b32.xlu0 %v580, 8
      %v789 = vpop.permute.xlu0 %788
      %790 = vrot.lane.b32.xlu0 %v634, 8
      %v791 = vpop.permute.xlu0 %790
      %792 = vrot.lane.b32.xlu0 %v583, 8
      %v793 = vpop.permute.xlu0 %792
      %794 = vrot.lane.b32.xlu0 %v635, 8
      %v795 = vpop.permute.xlu0 %794
      %796 = vrot.lane.b32.xlu0 %v586, 8
      %v797 = vpop.permute.xlu0 %796
      %798 = vrot.lane.b32.xlu0 %v636, 8
      %v799 = vpop.permute.xlu0 %798
      %800 = vrot.lane.b32.xlu0 %v589, 8
      %v801 = vpop.permute.xlu0 %800
      %802 = vrot.lane.b32.xlu0 %v637, 8
      %v803 = vpop.permute.xlu0 %802
      %804 = vrot.lane.b32.xlu0 %v592, 8
      %v805 = vpop.permute.xlu0 %804
      %806 = vrot.lane.b32.xlu0 %v638, 8
      %v807 = vpop.permute.xlu0 %806
      %808 = vrot.lane.b32.xlu0 %v595, 8
      %v809 = vpop.permute.xlu0 %808
      %810 = vrot.lane.b32.xlu0 %v639, 8
      %v811 = vpop.permute.xlu0 %810
      %812 = vrot.lane.b32.xlu0 %v598, 8
      %v813 = vpop.permute.xlu0 %812
      %814 = vrot.lane.b32.xlu0 %v640, 8
      %v815 = vpop.permute.xlu0 %814
      %816 = vrot.lane.b32.xlu0 %v601, 8
      %v817 = vpop.permute.xlu0 %816
      %818 = vrot.lane.b32.xlu0 %v641, 8
      %v819 = vpop.permute.xlu0 %818
      %868 = vrot.lane.b32.xlu0 %v536, 12
      %v869 = vpop.permute.xlu0 %868
      %870 = vrot.lane.b32.xlu0 %v452, 12
      %v871 = vpop.permute.xlu0 %870
      %872 = vrot.lane.b32.xlu0 %v537, 12
      %v873 = vpop.permute.xlu0 %872
      %874 = vrot.lane.b32.xlu0 %v455, 12
      %v875 = vpop.permute.xlu0 %874
      %876 = vrot.lane.b32.xlu0 %v538, 12
      %v877 = vpop.permute.xlu0 %876
      %878 = vrot.lane.b32.xlu0 %v458, 12
      %v879 = vpop.permute.xlu0 %878
      %880 = vrot.lane.b32.xlu0 %v539, 12
      %v881 = vpop.permute.xlu0 %880
      %882 = vrot.lane.b32.xlu0 %v461, 12
      %v883 = vpop.permute.xlu0 %882
      %884 = vrot.lane.b32.xlu0 %v540, 12
      %v885 = vpop.permute.xlu0 %884
      %886 = vrot.lane.b32.xlu0 %v464, 12
      %v887 = vpop.permute.xlu0 %886
      %888 = vrot.lane.b32.xlu0 %v541, 12
      %v889 = vpop.permute.xlu0 %888
      %890 = vrot.lane.b32.xlu0 %v467, 12
      %v891 = vpop.permute.xlu0 %890
      %892 = vrot.lane.b32.xlu0 %v542, 12
      %v893 = vpop.permute.xlu0 %892
      %894 = vrot.lane.b32.xlu0 %v470, 12
      %v895 = vpop.permute.xlu0 %894
      %896 = vrot.lane.b32.xlu0 %v543, 12
      %v897 = vpop.permute.xlu0 %896
      %898 = vrot.lane.b32.xlu0 %v473, 12
      %v899 = vpop.permute.xlu0 %898
      %900 = vrot.lane.b32.xlu0 %v544, 12
      %v901 = vpop.permute.xlu0 %900
      %902 = vrot.lane.b32.xlu0 %v476, 12
      %v903 = vpop.permute.xlu0 %902
      %904 = vrot.lane.b32.xlu0 %v545, 12
      %v905 = vpop.permute.xlu0 %904
      %906 = vrot.lane.b32.xlu0 %v479, 12
      %v907 = vpop.permute.xlu0 %906
      %908 = vrot.lane.b32.xlu0 %v546, 12
      %v909 = vpop.permute.xlu0 %908
      %910 = vrot.lane.b32.xlu0 %v482, 12
      %v911 = vpop.permute.xlu0 %910
      %912 = vrot.lane.b32.xlu0 %v547, 12
      %v913 = vpop.permute.xlu0 %912
      %914 = vrot.lane.b32.xlu0 %v485, 12
      %v915 = vpop.permute.xlu0 %914
      %916 = vrot.lane.b32.xlu0 %v548, 12
      %v917 = vpop.permute.xlu0 %916
      %918 = vrot.lane.b32.xlu0 %v488, 12
      %v919 = vpop.permute.xlu0 %918
      %920 = vrot.lane.b32.xlu0 %v549, 12
      %v921 = vpop.permute.xlu0 %920
      %922 = vrot.lane.b32.xlu0 %v491, 12
      %v923 = vpop.permute.xlu0 %922
      %924 = vrot.lane.b32.xlu0 %v550, 12
      %v925 = vpop.permute.xlu0 %924
      %926 = vrot.lane.b32.xlu0 %v494, 12
      %v927 = vpop.permute.xlu0 %926
      %928 = vrot.lane.b32.xlu0 %v551, 12
      %v929 = vpop.permute.xlu0 %928
      %930 = vrot.lane.b32.xlu0 %v497, 12
      %v931 = vpop.permute.xlu0 %930
      %964 = vrot.lane.b32.xlu0 %v378, 16
      %v965 = vpop.permute.xlu0 %964
      %966 = vrot.lane.b32.xlu0 %v379, 16
      %v967 = vpop.permute.xlu0 %966
      %968 = vrot.lane.b32.xlu0 %v380, 16
      %v969 = vpop.permute.xlu0 %968
      %970 = vrot.lane.b32.xlu0 %v381, 16
      %v971 = vpop.permute.xlu0 %970
      %972 = vrot.lane.b32.xlu0 %v382, 16
      %v973 = vpop.permute.xlu0 %972
      %974 = vrot.lane.b32.xlu0 %v383, 16
      %v975 = vpop.permute.xlu0 %974
      %976 = vrot.lane.b32.xlu0 %v384, 16
      %v977 = vpop.permute.xlu0 %976
      %978 = vrot.lane.b32.xlu0 %v385, 16
      %v979 = vpop.permute.xlu0 %978
      %980 = vrot.lane.b32.xlu0 %v386, 16
      %v981 = vpop.permute.xlu0 %980
      %982 = vrot.lane.b32.xlu0 %v387, 16
      %v983 = vpop.permute.xlu0 %982
      %984 = vrot.lane.b32.xlu0 %v388, 16
      %v985 = vpop.permute.xlu0 %984
      %986 = vrot.lane.b32.xlu0 %v389, 16
      %v987 = vpop.permute.xlu0 %986
      %988 = vrot.lane.b32.xlu0 %v390, 16
      %v989 = vpop.permute.xlu0 %988
      %990 = vrot.lane.b32.xlu0 %v391, 16
      %v991 = vpop.permute.xlu0 %990
      %992 = vrot.lane.b32.xlu0 %v392, 16
      %v993 = vpop.permute.xlu0 %992
      %994 = vrot.lane.b32.xlu0 %v393, 16
      %v995 = vpop.permute.xlu0 %994
      %996 = vrot.lane.b32.xlu0 %v394, 16
      %v997 = vpop.permute.xlu0 %996
      %998 = vrot.lane.b32.xlu0 %v395, 16
      %v999 = vpop.permute.xlu0 %998
      %1000 = vrot.lane.b32.xlu0 %v396, 16
      %v1001 = vpop.permute.xlu0 %1000
      %1002 = vrot.lane.b32.xlu0 %v397, 16
      %v1003 = vpop.permute.xlu0 %1002
      %1004 = vrot.lane.b32.xlu0 %v398, 16
      %v1005 = vpop.permute.xlu0 %1004
      %1006 = vrot.lane.b32.xlu0 %v399, 16
      %v1007 = vpop.permute.xlu0 %1006
      %1008 = vrot.lane.b32.xlu0 %v400, 16
      %v1009 = vpop.permute.xlu0 %1008
      %1010 = vrot.lane.b32.xlu0 %v401, 16
      %v1011 = vpop.permute.xlu0 %1010
      %1012 = vrot.lane.b32.xlu0 %v402, 16
      %v1013 = vpop.permute.xlu0 %1012
      %1014 = vrot.lane.b32.xlu0 %v403, 16
      %v1015 = vpop.permute.xlu0 %1014
      %1016 = vrot.lane.b32.xlu0 %v404, 16
      %v1017 = vpop.permute.xlu0 %1016
      %1018 = vrot.lane.b32.xlu0 %v405, 16
      %v1019 = vpop.permute.xlu0 %1018
      %1020 = vrot.lane.b32.xlu0 %v406, 16
      %v1021 = vpop.permute.xlu0 %1020
      %1022 = vrot.lane.b32.xlu0 %v407, 16
      %v1023 = vpop.permute.xlu0 %1022
      %1024 = vrot.lane.b32.xlu0 %v408, 16
      %v1025 = vpop.permute.xlu0 %1024
      %1026 = vrot.lane.b32.xlu0 %v409, 16
      %v1027 = vpop.permute.xlu0 %1026
      %1061 = vrot.lane.b32.xlu0 %v559, 20
      %v1062 = vpop.permute.xlu0 %1061
      %1063 = vrot.lane.b32.xlu0 %v627, 20
      %v1064 = vpop.permute.xlu0 %1063
      %1065 = vrot.lane.b32.xlu0 %v562, 20
      %v1066 = vpop.permute.xlu0 %1065
      %1067 = vrot.lane.b32.xlu0 %v628, 20
      %v1068 = vpop.permute.xlu0 %1067
      %1069 = vrot.lane.b32.xlu0 %v565, 20
      %v1070 = vpop.permute.xlu0 %1069
      %1071 = vrot.lane.b32.xlu0 %v629, 20
      %v1072 = vpop.permute.xlu0 %1071
      %1073 = vrot.lane.b32.xlu0 %v568, 20
      %v1074 = vpop.permute.xlu0 %1073
      %1075 = vrot.lane.b32.xlu0 %v630, 20
      %v1076 = vpop.permute.xlu0 %1075
      %1077 = vrot.lane.b32.xlu0 %v571, 20
      %v1078 = vpop.permute.xlu0 %1077
      %1079 = vrot.lane.b32.xlu0 %v631, 20
      %v1080 = vpop.permute.xlu0 %1079
      %1081 = vrot.lane.b32.xlu0 %v574, 20
      %v1082 = vpop.permute.xlu0 %1081
      %1083 = vrot.lane.b32.xlu0 %v632, 20
      %v1084 = vpop.permute.xlu0 %1083
      %1085 = vrot.lane.b32.xlu0 %v577, 20
      %v1086 = vpop.permute.xlu0 %1085
      %1087 = vrot.lane.b32.xlu0 %v633, 20
      %v1088 = vpop.permute.xlu0 %1087
      %1089 = vrot.lane.b32.xlu0 %v580, 20
      %v1090 = vpop.permute.xlu0 %1089
      %1091 = vrot.lane.b32.xlu0 %v634, 20
      %v1092 = vpop.permute.xlu0 %1091
      %1093 = vrot.lane.b32.xlu0 %v583, 20
      %v1094 = vpop.permute.xlu0 %1093
      %1095 = vrot.lane.b32.xlu0 %v635, 20
      %v1096 = vpop.permute.xlu0 %1095
      %1097 = vrot.lane.b32.xlu0 %v586, 20
      %v1098 = vpop.permute.xlu0 %1097
      %1099 = vrot.lane.b32.xlu0 %v636, 20
      %v1100 = vpop.permute.xlu0 %1099
      %1101 = vrot.lane.b32.xlu0 %v589, 20
      %v1102 = vpop.permute.xlu0 %1101
      %1103 = vrot.lane.b32.xlu0 %v637, 20
      %v1104 = vpop.permute.xlu0 %1103
      %1105 = vrot.lane.b32.xlu0 %v592, 20
      %v1106 = vpop.permute.xlu0 %1105
      %1107 = vrot.lane.b32.xlu0 %v638, 20
      %v1108 = vpop.permute.xlu0 %1107
      %1109 = vrot.lane.b32.xlu0 %v595, 20
      %v1110 = vpop.permute.xlu0 %1109
      %1111 = vrot.lane.b32.xlu0 %v639, 20
      %v1112 = vpop.permute.xlu0 %1111
      %1113 = vrot.lane.b32.xlu0 %v598, 20
      %v1114 = vpop.permute.xlu0 %1113
      %1115 = vrot.lane.b32.xlu0 %v640, 20
      %v1116 = vpop.permute.xlu0 %1115
      %1117 = vrot.lane.b32.xlu0 %v601, 20
      %v1118 = vpop.permute.xlu0 %1117
      %1119 = vrot.lane.b32.xlu0 %v641, 20
      %v1120 = vpop.permute.xlu0 %1119
      %1121 = vrot.lane.b32.xlu0 %v604, 20
      %v1122 = vpop.permute.xlu0 %1121
      %1123 = vrot.lane.b32.xlu0 %v642, 20
      %v1124 = vpop.permute.xlu0 %1123
      %1158 = vrot.lane.b32.xlu0 %v537, 24
      %v1159 = vpop.permute.xlu0 %1158
      %1160 = vrot.lane.b32.xlu0 %v455, 24
      %v1161 = vpop.permute.xlu0 %1160
      %1162 = vrot.lane.b32.xlu0 %v538, 24
      %v1163 = vpop.permute.xlu0 %1162
      %1164 = vrot.lane.b32.xlu0 %v458, 24
      %v1165 = vpop.permute.xlu0 %1164
      %1166 = vrot.lane.b32.xlu0 %v539, 24
      %v1167 = vpop.permute.xlu0 %1166
      %1168 = vrot.lane.b32.xlu0 %v461, 24
      %v1169 = vpop.permute.xlu0 %1168
      %1170 = vrot.lane.b32.xlu0 %v540, 24
      %v1171 = vpop.permute.xlu0 %1170
      %1172 = vrot.lane.b32.xlu0 %v464, 24
      %v1173 = vpop.permute.xlu0 %1172
      %1174 = vrot.lane.b32.xlu0 %v541, 24
      %v1175 = vpop.permute.xlu0 %1174
      %1176 = vrot.lane.b32.xlu0 %v467, 24
      %v1177 = vpop.permute.xlu0 %1176
      %1178 = vrot.lane.b32.xlu0 %v542, 24
      %v1179 = vpop.permute.xlu0 %1178
      %1180 = vrot.lane.b32.xlu0 %v470, 24
      %v1181 = vpop.permute.xlu0 %1180
      %1182 = vrot.lane.b32.xlu0 %v543, 24
      %v1183 = vpop.permute.xlu0 %1182
      %1184 = vrot.lane.b32.xlu0 %v473, 24
      %v1185 = vpop.permute.xlu0 %1184
      %1186 = vrot.lane.b32.xlu0 %v544, 24
      %v1187 = vpop.permute.xlu0 %1186
      %1188 = vrot.lane.b32.xlu0 %v476, 24
      %v1189 = vpop.permute.xlu0 %1188
      %1190 = vrot.lane.b32.xlu0 %v545, 24
      %v1191 = vpop.permute.xlu0 %1190
      %1192 = vrot.lane.b32.xlu0 %v479, 24
      %v1193 = vpop.permute.xlu0 %1192
      %1194 = vrot.lane.b32.xlu0 %v546, 24
      %v1195 = vpop.permute.xlu0 %1194
      %1196 = vrot.lane.b32.xlu0 %v482, 24
      %v1197 = vpop.permute.xlu0 %1196
      %1198 = vrot.lane.b32.xlu0 %v547, 24
      %v1199 = vpop.permute.xlu0 %1198
      %1200 = vrot.lane.b32.xlu0 %v485, 24
      %v1201 = vpop.permute.xlu0 %1200
      %1202 = vrot.lane.b32.xlu0 %v548, 24
      %v1203 = vpop.permute.xlu0 %1202
      %1204 = vrot.lane.b32.xlu0 %v488, 24
      %v1205 = vpop.permute.xlu0 %1204
      %1206 = vrot.lane.b32.xlu0 %v549, 24
      %v1207 = vpop.permute.xlu0 %1206
      %1208 = vrot.lane.b32.xlu0 %v491, 24
      %v1209 = vpop.permute.xlu0 %1208
      %1210 = vrot.lane.b32.xlu0 %v550, 24
      %v1211 = vpop.permute.xlu0 %1210
      %1212 = vrot.lane.b32.xlu0 %v494, 24
      %v1213 = vpop.permute.xlu0 %1212
      %1214 = vrot.lane.b32.xlu0 %v551, 24
      %v1215 = vpop.permute.xlu0 %1214
      %1216 = vrot.lane.b32.xlu0 %v497, 24
      %v1217 = vpop.permute.xlu0 %1216
      %1218 = vrot.lane.b32.xlu0 %v552, 24
      %v1219 = vpop.permute.xlu0 %1218
      %1220 = vrot.lane.b32.xlu0 %v500, 24
      %v1221 = vpop.permute.xlu0 %1220
      %1254 = vrot.lane.b32.xlu0 %v380, 28
      %v1255 = vpop.permute.xlu0 %1254
      %1256 = vrot.lane.b32.xlu0 %v381, 28
      %v1257 = vpop.permute.xlu0 %1256
      %1258 = vrot.lane.b32.xlu0 %v382, 28
      %v1259 = vpop.permute.xlu0 %1258
      %1260 = vrot.lane.b32.xlu0 %v383, 28
      %v1261 = vpop.permute.xlu0 %1260
      %1262 = vrot.lane.b32.xlu0 %v384, 28
      %v1263 = vpop.permute.xlu0 %1262
      %1264 = vrot.lane.b32.xlu0 %v385, 28
      %v1265 = vpop.permute.xlu0 %1264
      %1266 = vrot.lane.b32.xlu0 %v386, 28
      %v1267 = vpop.permute.xlu0 %1266
      %1268 = vrot.lane.b32.xlu0 %v387, 28
      %v1269 = vpop.permute.xlu0 %1268
      %1270 = vrot.lane.b32.xlu0 %v388, 28
      %v1271 = vpop.permute.xlu0 %1270
      %1272 = vrot.lane.b32.xlu0 %v389, 28
      %v1273 = vpop.permute.xlu0 %1272
      %1274 = vrot.lane.b32.xlu0 %v390, 28
      %v1275 = vpop.permute.xlu0 %1274
      %1276 = vrot.lane.b32.xlu0 %v391, 28
      %v1277 = vpop.permute.xlu0 %1276
      %1278 = vrot.lane.b32.xlu0 %v392, 28
      %v1279 = vpop.permute.xlu0 %1278
      %1280 = vrot.lane.b32.xlu0 %v393, 28
      %v1281 = vpop.permute.xlu0 %1280
      %1282 = vrot.lane.b32.xlu0 %v394, 28
      %v1283 = vpop.permute.xlu0 %1282
      %1284 = vrot.lane.b32.xlu0 %v395, 28
      %v1285 = vpop.permute.xlu0 %1284
      %1286 = vrot.lane.b32.xlu0 %v396, 28
      %v1287 = vpop.permute.xlu0 %1286
      %1288 = vrot.lane.b32.xlu0 %v397, 28
      %v1289 = vpop.permute.xlu0 %1288
      %1290 = vrot.lane.b32.xlu0 %v398, 28
      %v1291 = vpop.permute.xlu0 %1290
      %1292 = vrot.lane.b32.xlu0 %v399, 28
      %v1293 = vpop.permute.xlu0 %1292
      %1294 = vrot.lane.b32.xlu0 %v400, 28
      %v1295 = vpop.permute.xlu0 %1294
      %1296 = vrot.lane.b32.xlu0 %v401, 28
      %v1297 = vpop.permute.xlu0 %1296
      %1298 = vrot.lane.b32.xlu0 %v402, 28
      %v1299 = vpop.permute.xlu0 %1298
      %1300 = vrot.lane.b32.xlu0 %v403, 28
      %v1301 = vpop.permute.xlu0 %1300
      %1302 = vrot.lane.b32.xlu0 %v404, 28
      %v1303 = vpop.permute.xlu0 %1302
      %1304 = vrot.lane.b32.xlu0 %v405, 28
      %v1305 = vpop.permute.xlu0 %1304
      %1306 = vrot.lane.b32.xlu0 %v406, 28
      %v1307 = vpop.permute.xlu0 %1306
      %1308 = vrot.lane.b32.xlu0 %v407, 28
      %v1309 = vpop.permute.xlu0 %1308
      %1310 = vrot.lane.b32.xlu0 %v408, 28
      %v1311 = vpop.permute.xlu0 %1310
      %1312 = vrot.lane.b32.xlu0 %v409, 28
      %v1313 = vpop.permute.xlu0 %1312
      %1314 = vrot.lane.b32.xlu0 %v376, 28
      %v1315 = vpop.permute.xlu0 %1314
      %1316 = vrot.lane.b32.xlu0 %v377, 28
      %v1317 = vpop.permute.xlu0 %1316
      %1351 = vrot.lane.b32.xlu0 %v562, 32
      %v1352 = vpop.permute.xlu0 %1351
      %1353 = vrot.lane.b32.xlu0 %v628, 32
      %v1354 = vpop.permute.xlu0 %1353
      %1355 = vrot.lane.b32.xlu0 %v565, 32
      %v1356 = vpop.permute.xlu0 %1355
      %1357 = vrot.lane.b32.xlu0 %v629, 32
      %v1358 = vpop.permute.xlu0 %1357
      %1359 = vrot.lane.b32.xlu0 %v568, 32
      %v1360 = vpop.permute.xlu0 %1359
      %1361 = vrot.lane.b32.xlu0 %v630, 32
      %v1362 = vpop.permute.xlu0 %1361
      %1363 = vrot.lane.b32.xlu0 %v571, 32
      %v1364 = vpop.permute.xlu0 %1363
      %1365 = vrot.lane.b32.xlu0 %v631, 32
      %v1366 = vpop.permute.xlu0 %1365
      %1367 = vrot.lane.b32.xlu0 %v574, 32
      %v1368 = vpop.permute.xlu0 %1367
      %1369 = vrot.lane.b32.xlu0 %v632, 32
      %v1370 = vpop.permute.xlu0 %1369
      %1371 = vrot.lane.b32.xlu0 %v577, 32
      %v1372 = vpop.permute.xlu0 %1371
      %1373 = vrot.lane.b32.xlu0 %v633, 32
      %v1374 = vpop.permute.xlu0 %1373
      %1375 = vrot.lane.b32.xlu0 %v580, 32
      %v1376 = vpop.permute.xlu0 %1375
      %1377 = vrot.lane.b32.xlu0 %v634, 32
      %v1378 = vpop.permute.xlu0 %1377
      %1379 = vrot.lane.b32.xlu0 %v583, 32
      %v1380 = vpop.permute.xlu0 %1379
      %1381 = vrot.lane.b32.xlu0 %v635, 32
      %v1382 = vpop.permute.xlu0 %1381
      %1383 = vrot.lane.b32.xlu0 %v586, 32
      %v1384 = vpop.permute.xlu0 %1383
      %1385 = vrot.lane.b32.xlu0 %v636, 32
      %v1386 = vpop.permute.xlu0 %1385
      %1387 = vrot.lane.b32.xlu0 %v589, 32
      %v1388 = vpop.permute.xlu0 %1387
      %1389 = vrot.lane.b32.xlu0 %v637, 32
      %v1390 = vpop.permute.xlu0 %1389
      %1391 = vrot.lane.b32.xlu0 %v592, 32
      %v1392 = vpop.permute.xlu0 %1391
      %1393 = vrot.lane.b32.xlu0 %v638, 32
      %v1394 = vpop.permute.xlu0 %1393
      %1395 = vrot.lane.b32.xlu0 %v595, 32
      %v1396 = vpop.permute.xlu0 %1395
      %1397 = vrot.lane.b32.xlu0 %v639, 32
      %v1398 = vpop.permute.xlu0 %1397
      %1399 = vrot.lane.b32.xlu0 %v598, 32
      %v1400 = vpop.permute.xlu0 %1399
      %1401 = vrot.lane.b32.xlu0 %v640, 32
      %v1402 = vpop.permute.xlu0 %1401
      %1403 = vrot.lane.b32.xlu0 %v601, 32
      %v1404 = vpop.permute.xlu0 %1403
      %1405 = vrot.lane.b32.xlu0 %v641, 32
      %v1406 = vpop.permute.xlu0 %1405
      %1407 = vrot.lane.b32.xlu0 %v604, 32
      %v1408 = vpop.permute.xlu0 %1407
      %1409 = vrot.lane.b32.xlu0 %v642, 32
      %v1410 = vpop.permute.xlu0 %1409
      %1411 = vrot.lane.b32.xlu0 %v607, 32
      %v1412 = vpop.permute.xlu0 %1411
      %1413 = vrot.lane.b32.xlu0 %v643, 32
      %v1414 = vpop.permute.xlu0 %1413
      %vm1447 = vcmask 31744
      %v1448 = vsel %vm1447, %v535, %v645
      %v1449 = vsel %vm1447, %v449, %v647
      %v1450 = vsel %vm1447, %v536, %v649
      %v1451 = vsel %vm1447, %v452, %v651
      %v1452 = vsel %vm1447, %v537, %v653
      %v1453 = vsel %vm1447, %v455, %v655
      %v1454 = vsel %vm1447, %v538, %v657
      %v1455 = vsel %vm1447, %v458, %v659
      %v1456 = vsel %vm1447, %v539, %v661
      %v1457 = vsel %vm1447, %v461, %v663
      %v1458 = vsel %vm1447, %v540, %v665
      %v1459 = vsel %vm1447, %v464, %v667
      %v1460 = vsel %vm1447, %v541, %v669
      %v1461 = vsel %vm1447, %v467, %v671
      %v1462 = vsel %vm1447, %v542, %v673
      %v1463 = vsel %vm1447, %v470, %v675
      %v1464 = vsel %vm1447, %v543, %v677
      %v1465 = vsel %vm1447, %v473, %v679
      %v1466 = vsel %vm1447, %v544, %v681
      %v1467 = vsel %vm1447, %v476, %v683
      %v1468 = vsel %vm1447, %v545, %v685
      %v1469 = vsel %vm1447, %v479, %v687
      %v1470 = vsel %vm1447, %v546, %v689
      %v1471 = vsel %vm1447, %v482, %v691
      %v1472 = vsel %vm1447, %v547, %v693
      %v1473 = vsel %vm1447, %v485, %v695
      %v1474 = vsel %vm1447, %v548, %v697
      %v1475 = vsel %vm1447, %v488, %v699
      %v1476 = vsel %vm1447, %v549, %v701
      %v1477 = vsel %vm1447, %v491, %v703
      %v1478 = vsel %vm1447, %v550, %v705
      %v1479 = vsel %vm1447, %v494, %v707
      %vm1480 = vcmask 64512
      %v1481 = vsel %vm1480, %v1448, %v757
      %v1482 = vsel %vm1480, %v1449, %v759
      %v1483 = vsel %vm1480, %v1450, %v761
      %v1484 = vsel %vm1480, %v1451, %v763
      %v1485 = vsel %vm1480, %v1452, %v765
      %v1486 = vsel %vm1480, %v1453, %v767
      %v1487 = vsel %vm1480, %v1454, %v769
      %v1488 = vsel %vm1480, %v1455, %v771
      %v1489 = vsel %vm1480, %v1456, %v773
      %v1490 = vsel %vm1480, %v1457, %v775
      %v1491 = vsel %vm1480, %v1458, %v777
      %v1492 = vsel %vm1480, %v1459, %v779
      %v1493 = vsel %vm1480, %v1460, %v781
      %v1494 = vsel %vm1480, %v1461, %v783
      %v1495 = vsel %vm1480, %v1462, %v785
      %v1496 = vsel %vm1480, %v1463, %v787
      %v1497 = vsel %vm1480, %v1464, %v789
      %v1498 = vsel %vm1480, %v1465, %v791
      %v1499 = vsel %vm1480, %v1466, %v793
      %v1500 = vsel %vm1480, %v1467, %v795
      %v1501 = vsel %vm1480, %v1468, %v797
      %v1502 = vsel %vm1480, %v1469, %v799
      %v1503 = vsel %vm1480, %v1470, %v801
      %v1504 = vsel %vm1480, %v1471, %v803
      %v1505 = vsel %vm1480, %v1472, %v805
      %v1506 = vsel %vm1480, %v1473, %v807
      %v1507 = vsel %vm1480, %v1474, %v809
      %v1508 = vsel %vm1480, %v1475, %v811
      %v1509 = vsel %vm1480, %v1476, %v813
      %v1510 = vsel %vm1480, %v1477, %v815
      %v1511 = vsel %vm1480, %v1478, %v817
      %v1512 = vsel %vm1480, %v1479, %v819
      %vm1513 = vcmask 97280
      %v1514 = vsel %vm1513, %v1481, %v869
      %v1515 = vsel %vm1513, %v1482, %v871
      %v1516 = vsel %vm1513, %v1483, %v873
      %v1517 = vsel %vm1513, %v1484, %v875
      %v1518 = vsel %vm1513, %v1485, %v877
      %v1519 = vsel %vm1513, %v1486, %v879
      %v1520 = vsel %vm1513, %v1487, %v881
      %v1521 = vsel %vm1513, %v1488, %v883
      %v1522 = vsel %vm1513, %v1489, %v885
      %v1523 = vsel %vm1513, %v1490, %v887
      %v1524 = vsel %vm1513, %v1491, %v889
      %v1525 = vsel %vm1513, %v1492, %v891
      %v1526 = vsel %vm1513, %v1493, %v893
      %v1527 = vsel %vm1513, %v1494, %v895
      %v1528 = vsel %vm1513, %v1495, %v897
      %v1529 = vsel %vm1513, %v1496, %v899
      %v1530 = vsel %vm1513, %v1497, %v901
      %v1531 = vsel %vm1513, %v1498, %v903
      %v1532 = vsel %vm1513, %v1499, %v905
      %v1533 = vsel %vm1513, %v1500, %v907
      %v1534 = vsel %vm1513, %v1501, %v909
      %v1535 = vsel %vm1513, %v1502, %v911
      %v1536 = vsel %vm1513, %v1503, %v913
      %v1537 = vsel %vm1513, %v1504, %v915
      %v1538 = vsel %vm1513, %v1505, %v917
      %v1539 = vsel %vm1513, %v1506, %v919
      %v1540 = vsel %vm1513, %v1507, %v921
      %v1541 = vsel %vm1513, %v1508, %v923
      %v1542 = vsel %vm1513, %v1509, %v925
      %v1543 = vsel %vm1513, %v1510, %v927
      %v1544 = vsel %vm1513, %v1511, %v929
      %v1545 = vsel %vm1513, %v1512, %v931
      %vm1546 = vcmask 130048
      %v1547 = vsel %vm1546, %v1514, %v965
      %v1548 = vsel %vm1546, %v1515, %v967
      %v1549 = vsel %vm1546, %v1516, %v969
      %v1550 = vsel %vm1546, %v1517, %v971
      %v1551 = vsel %vm1546, %v1518, %v973
      %v1552 = vsel %vm1546, %v1519, %v975
      %v1553 = vsel %vm1546, %v1520, %v977
      %v1554 = vsel %vm1546, %v1521, %v979
      %v1555 = vsel %vm1546, %v1522, %v981
      %v1556 = vsel %vm1546, %v1523, %v983
      %v1557 = vsel %vm1546, %v1524, %v985
      %v1558 = vsel %vm1546, %v1525, %v987
      %v1559 = vsel %vm1546, %v1526, %v989
      %v1560 = vsel %vm1546, %v1527, %v991
      %v1561 = vsel %vm1546, %v1528, %v993
      %v1562 = vsel %vm1546, %v1529, %v995
      %v1563 = vsel %vm1546, %v1530, %v997
      %v1564 = vsel %vm1546, %v1531, %v999
      %v1565 = vsel %vm1546, %v1532, %v1001
      %v1566 = vsel %vm1546, %v1533, %v1003
      %v1567 = vsel %vm1546, %v1534, %v1005
      %v1568 = vsel %vm1546, %v1535, %v1007
      %v1569 = vsel %vm1546, %v1536, %v1009
      %v1570 = vsel %vm1546, %v1537, %v1011
      %v1571 = vsel %vm1546, %v1538, %v1013
      %v1572 = vsel %vm1546, %v1539, %v1015
      %v1573 = vsel %vm1546, %v1540, %v1017
      %v1574 = vsel %vm1546, %v1541, %v1019
      %v1575 = vsel %vm1546, %v1542, %v1021
      %v1576 = vsel %vm1546, %v1543, %v1023
      %v1577 = vsel %vm1546, %v1544, %v1025
      %v1578 = vsel %vm1546, %v1545, %v1027
      %vm1579 = vcmask 162816
      %v1580 = vsel %vm1579, %v1547, %v1062
      %v1581 = vsel %vm1579, %v1548, %v1064
      %v1582 = vsel %vm1579, %v1549, %v1066
      %v1583 = vsel %vm1579, %v1550, %v1068
      %v1584 = vsel %vm1579, %v1551, %v1070
      %v1585 = vsel %vm1579, %v1552, %v1072
      %v1586 = vsel %vm1579, %v1553, %v1074
      %v1587 = vsel %vm1579, %v1554, %v1076
      %v1588 = vsel %vm1579, %v1555, %v1078
      %v1589 = vsel %vm1579, %v1556, %v1080
      %v1590 = vsel %vm1579, %v1557, %v1082
      %v1591 = vsel %vm1579, %v1558, %v1084
      %v1592 = vsel %vm1579, %v1559, %v1086
      %v1593 = vsel %vm1579, %v1560, %v1088
      %v1594 = vsel %vm1579, %v1561, %v1090
      %v1595 = vsel %vm1579, %v1562, %v1092
      %v1596 = vsel %vm1579, %v1563, %v1094
      %v1597 = vsel %vm1579, %v1564, %v1096
      %v1598 = vsel %vm1579, %v1565, %v1098
      %v1599 = vsel %vm1579, %v1566, %v1100
      %v1600 = vsel %vm1579, %v1567, %v1102
      %v1601 = vsel %vm1579, %v1568, %v1104
      %v1602 = vsel %vm1579, %v1569, %v1106
      %v1603 = vsel %vm1579, %v1570, %v1108
      %v1604 = vsel %vm1579, %v1571, %v1110
      %v1605 = vsel %vm1579, %v1572, %v1112
      %v1606 = vsel %vm1579, %v1573, %v1114
      %v1607 = vsel %vm1579, %v1574, %v1116
      %v1608 = vsel %vm1579, %v1575, %v1118
      %v1609 = vsel %vm1579, %v1576, %v1120
      %v1610 = vsel %vm1579, %v1577, %v1122
      %v1611 = vsel %vm1579, %v1578, %v1124
      %vm1612 = vcmask 195584
      %v1613 = vsel %vm1612, %v1580, %v1159
      %v1614 = vsel %vm1612, %v1581, %v1161
      %v1615 = vsel %vm1612, %v1582, %v1163
      %v1616 = vsel %vm1612, %v1583, %v1165
      %v1617 = vsel %vm1612, %v1584, %v1167
      %v1618 = vsel %vm1612, %v1585, %v1169
      %v1619 = vsel %vm1612, %v1586, %v1171
      %v1620 = vsel %vm1612, %v1587, %v1173
      %v1621 = vsel %vm1612, %v1588, %v1175
      %v1622 = vsel %vm1612, %v1589, %v1177
      %v1623 = vsel %vm1612, %v1590, %v1179
      %v1624 = vsel %vm1612, %v1591, %v1181
      %v1625 = vsel %vm1612, %v1592, %v1183
      %v1626 = vsel %vm1612, %v1593, %v1185
      %v1627 = vsel %vm1612, %v1594, %v1187
      %v1628 = vsel %vm1612, %v1595, %v1189
      %v1629 = vsel %vm1612, %v1596, %v1191
      %v1630 = vsel %vm1612, %v1597, %v1193
      %v1631 = vsel %vm1612, %v1598, %v1195
      %v1632 = vsel %vm1612, %v1599, %v1197
      %v1633 = vsel %vm1612, %v1600, %v1199
      %v1634 = vsel %vm1612, %v1601, %v1201
      %v1635 = vsel %vm1612, %v1602, %v1203
      %v1636 = vsel %vm1612, %v1603, %v1205
      %v1637 = vsel %vm1612, %v1604, %v1207
      %v1638 = vsel %vm1612, %v1605, %v1209
      %v1639 = vsel %vm1612, %v1606, %v1211
      %v1640 = vsel %vm1612, %v1607, %v1213
      %v1641 = vsel %vm1612, %v1608, %v1215
      %v1642 = vsel %vm1612, %v1609, %v1217
      %v1643 = vsel %vm1612, %v1610, %v1219
      %v1644 = vsel %vm1612, %v1611, %v1221
      %vm1645 = vcmask 228352
      %v1646 = vsel %vm1645, %v1613, %v1255
      %v1647 = vsel %vm1645, %v1614, %v1257
      %v1648 = vsel %vm1645, %v1615, %v1259
      %v1649 = vsel %vm1645, %v1616, %v1261
      %v1650 = vsel %vm1645, %v1617, %v1263
      %v1651 = vsel %vm1645, %v1618, %v1265
      %v1652 = vsel %vm1645, %v1619, %v1267
      %v1653 = vsel %vm1645, %v1620, %v1269
      %v1654 = vsel %vm1645, %v1621, %v1271
      %v1655 = vsel %vm1645, %v1622, %v1273
      %v1656 = vsel %vm1645, %v1623, %v1275
      %v1657 = vsel %vm1645, %v1624, %v1277
      %v1658 = vsel %vm1645, %v1625, %v1279
      %v1659 = vsel %vm1645, %v1626, %v1281
      %v1660 = vsel %vm1645, %v1627, %v1283
      %v1661 = vsel %vm1645, %v1628, %v1285
      %v1662 = vsel %vm1645, %v1629, %v1287
      %v1663 = vsel %vm1645, %v1630, %v1289
      %v1664 = vsel %vm1645, %v1631, %v1291
      %v1665 = vsel %vm1645, %v1632, %v1293
      %v1666 = vsel %vm1645, %v1633, %v1295
      %v1667 = vsel %vm1645, %v1634, %v1297
      %v1668 = vsel %vm1645, %v1635, %v1299
      %v1669 = vsel %vm1645, %v1636, %v1301
      %v1670 = vsel %vm1645, %v1637, %v1303
      %v1671 = vsel %vm1645, %v1638, %v1305
      %v1672 = vsel %vm1645, %v1639, %v1307
      %v1673 = vsel %vm1645, %v1640, %v1309
      %v1674 = vsel %vm1645, %v1641, %v1311
      %v1675 = vsel %vm1645, %v1642, %v1313
      %v1676 = vsel %vm1645, %v1643, %v1315
      %v1677 = vsel %vm1645, %v1644, %v1317
      %vm1678 = vcmask 261120
      %v1679 = vsel %vm1678, %v1646, %v1352
      %v1680 = vsel %vm1678, %v1647, %v1354
      %v1681 = vsel %vm1678, %v1648, %v1356
      %v1682 = vsel %vm1678, %v1649, %v1358
      %v1683 = vsel %vm1678, %v1650, %v1360
      %v1684 = vsel %vm1678, %v1651, %v1362
      %v1685 = vsel %vm1678, %v1652, %v1364
      %v1686 = vsel %vm1678, %v1653, %v1366
      %v1687 = vsel %vm1678, %v1654, %v1368
      %v1688 = vsel %vm1678, %v1655, %v1370
      %v1689 = vsel %vm1678, %v1656, %v1372
      %v1690 = vsel %vm1678, %v1657, %v1374
      %v1691 = vsel %vm1678, %v1658, %v1376
      %v1692 = vsel %vm1678, %v1659, %v1378
      %v1693 = vsel %vm1678, %v1660, %v1380
      %v1694 = vsel %vm1678, %v1661, %v1382
      %v1695 = vsel %vm1678, %v1662, %v1384
      %v1696 = vsel %vm1678, %v1663, %v1386
      %v1697 = vsel %vm1678, %v1664, %v1388
      %v1698 = vsel %vm1678, %v1665, %v1390
      %v1699 = vsel %vm1678, %v1666, %v1392
      %v1700 = vsel %vm1678, %v1667, %v1394
      %v1701 = vsel %vm1678, %v1668, %v1396
      %v1702 = vsel %vm1678, %v1669, %v1398
      %v1703 = vsel %vm1678, %v1670, %v1400
      %v1704 = vsel %vm1678, %v1671, %v1402
      %v1705 = vsel %vm1678, %v1672, %v1404
      %v1706 = vsel %vm1678, %v1673, %v1406
      %v1707 = vsel %vm1678, %v1674, %v1408
      %v1708 = vsel %vm1678, %v1675, %v1410
      %v1709 = vsel %vm1678, %v1676, %v1412
      %v1710 = vsel %vm1678, %v1677, %v1414
      %v1711 = vld [vmem:[%s3] sm:$0xff]
      %v1712 = vld [vmem:[%s3 + $0x8] sm:$0xff]
      %v1713 = vld [vmem:[%s3 + $0x10] sm:$0xff]
      %v1714 = vld [vmem:[%s3 + $0x18] sm:$0xff]
      %v1715 = vld [vmem:[%s3 + $0x20] sm:$0xf]
      %vm1716 = vcmask 293888
      %v1718 = vsel %vm1716, %v1679, 0
      %v1721 = vsel %vm1716, %v1680, 0
      %v1724 = vsel %vm1716, %v1681, 0
      %v1727 = vsel %vm1716, %v1682, 0
      %v1730 = vsel %vm1716, %v1683, 0
      %v1733 = vsel %vm1716, %v1684, 0
      %v1736 = vsel %vm1716, %v1685, 0
      %v1739 = vsel %vm1716, %v1686, 0
      %v1742 = vsel %vm1716, %v1687, 0
      %v1745 = vsel %vm1716, %v1688, 0
      %v1748 = vsel %vm1716, %v1689, 0
      %v1751 = vsel %vm1716, %v1690, 0
      %v1754 = vsel %vm1716, %v1691, 0
      %v1757 = vsel %vm1716, %v1692, 0
      %v1760 = vsel %vm1716, %v1693, 0
      %v1763 = vsel %vm1716, %v1694, 0
      %v1766 = vsel %vm1716, %v1695, 0
      %v1769 = vsel %vm1716, %v1696, 0
      %v1772 = vsel %vm1716, %v1697, 0
      %v1775 = vsel %vm1716, %v1698, 0
      %v1778 = vsel %vm1716, %v1699, 0
      %v1781 = vsel %vm1716, %v1700, 0
      %v1784 = vsel %vm1716, %v1701, 0
      %v1787 = vsel %vm1716, %v1702, 0
      %v1790 = vsel %vm1716, %v1703, 0
      %v1793 = vsel %vm1716, %v1704, 0
      %v1796 = vsel %vm1716, %v1705, 0
      %v1799 = vsel %vm1716, %v1706, 0
      %v1802 = vsel %vm1716, %v1707, 0
      %v1805 = vsel %vm1716, %v1708, 0
      %v1808 = vsel %vm1716, %v1709, 0
      %v1811 = vsel %vm1716, %v1710, 0
      %vm1813 = vcmask 1043456
      %v1815 = vsel %vm1813, %v1715, 0
      %1817 = vmatprep.subr.mxu0 0.0
      %1818 = vmatpush1.msra.mxu0 %v1711
      %1819 = vmatprep.subr.mxu0 0.0
      %1820 = vmatpush1.msra.mxu0 %v1712
      %1821 = vmatprep.subr.mxu0 0.0
      %1822 = vmatpush1.msra.mxu0 %v1713
      %1823 = vmatprep.subr.mxu0 0.0
      %1824 = vmatpush1.msra.mxu0 %v1714
      %1825 = vmatprep.subr.mxu0 0.0
      %1826 = vmatpush1.msra.mxu0 %v1815
      %1827 = vmatprep.subr.mxu0 0.0
      %1828 = vmatpush1.msra.mxu0 0.0
      %1829 = vmatprep.subr.mxu0 0.0
      %1830 = vmatpush1.msra.mxu0 0.0
      %1831 = vmatprep.subr.mxu0 0.0
      %1832 = vmatpush1.msra.mxu0 0.0
      %1833 = vmatprep.subr.mxu0 0.0
      %1834 = vmatpush1.msra.mxu0 0.0
      %1835 = vmatprep.subr.mxu0 0.0
      %1836 = vmatpush1.msra.mxu0 0.0
      %1837 = vmatprep.subr.mxu0 0.0
      %1838 = vmatpush1.msra.mxu0 0.0
      %1839 = vmatprep.subr.mxu0 0.0
      %1840 = vmatpush1.msra.mxu0 0.0
      %1841 = vmatprep.subr.mxu0 0.0
      %1842 = vmatpush1.msra.mxu0 0.0
      %1843 = vmatprep.subr.mxu0 0.0
      %1844 = vmatpush1.msra.mxu0 0.0
      %1845 = vmatprep.subr.mxu0 0.0
      %1846 = vmatpush1.msra.mxu0 0.0
      %1847 = vmatprep.subr.mxu0 0.0
      %1848 = vmatpush1.msra.mxu0 0.0
      %1849 = vmatprep.subr.mxu0 0.0
      %1850 = vmatpush1.msra.mxu0 0.0
      %1851 = vmatprep.subr.mxu0 0.0
      %1852 = vmatpush1.msra.mxu0 0.0
      %1853 = vmatprep.subr.mxu0 0.0
      %1854 = vmatpush1.msra.mxu0 0.0
      %1855 = vmatprep.subr.mxu0 0.0
      %1856 = vmatpush1.msra.mxu0 0.0
      %1857 = vmatprep.subr.mxu0 0.0
      %1858 = vmatpush1.msra.mxu0 0.0
      %1859 = vmatprep.subr.mxu0 0.0
      %1860 = vmatpush1.msra.mxu0 0.0
      %1861 = vmatprep.subr.mxu0 0.0
      %1862 = vmatpush1.msra.mxu0 0.0
      %1863 = vmatprep.subr.mxu0 0.0
      %1864 = vmatpush1.msra.mxu0 0.0
      %1865 = vmatprep.subr.mxu0 0.0
      %1866 = vmatpush1.msra.mxu0 0.0
      %1867 = vmatprep.subr.mxu0 0.0
      %1868 = vmatpush1.msra.mxu0 0.0
      %1869 = vmatprep.subr.mxu0 0.0
      %1870 = vmatpush1.msra.mxu0 0.0
      %1871 = vmatprep.subr.mxu0 0.0
      %1872 = vmatpush1.msra.mxu0 0.0
      %1873 = vmatprep.subr.mxu0 0.0
      %1874 = vmatpush1.msra.mxu0 0.0
      %1875 = vmatprep.subr.mxu0 0.0
      %1876 = vmatpush1.msra.mxu0 0.0
      %1877 = vmatprep.subr.mxu0 0.0
      %1878 = vmatpush1.msra.mxu0 0.0
      %1879 = vmatprep.subr.mxu0 0.0
      %1880 = vmatpush1.msra.mxu0 0.0
      %1881 = vmatprep.mubr.f32.mxu0 0.0
      %1882 = vmatmul.mubr.f32.gmra.mrb[0].mxu0 %v1718
      %v1883 = vpop.f32.mrb[0].mxu0
      %v1884 = vadd.f32 0.0, %v1883
      %v1885 = vpop.f32.mrb[0].mxu0
      %1886 = vmatprep.mubr.f32.mxu0 0.0
      %1887 = vmatmul.mubr.f32.gmra.mrb[0].mxu0 %v1721
      %v1888 = vpop.f32.mrb[0].mxu0
      %v1889 = vadd.f32 0.0, %v1888
      %v1890 = vpop.f32.mrb[0].mxu0
      %1891 = vmatprep.mubr.f32.mxu0 0.0
      %1892 = vmatmul.mubr.f32.gmra.mrb[0].mxu0 %v1724
      %v1893 = vpop.f32.mrb[0].mxu0
      %v1894 = vadd.f32 0.0, %v1893
      %v1895 = vpop.f32.mrb[0].mxu0
      %1896 = vmatprep.mubr.f32.mxu0 0.0
      %1897 = vmatmul.mubr.f32.gmra.mrb[0].mxu0 %v1727
      %v1898 = vpop.f32.mrb[0].mxu0
      %v1899 = vadd.f32 0.0, %v1898
      %v1900 = vpop.f32.mrb[0].mxu0
      %1901 = vmatprep.mubr.f32.mxu0 0.0
      %1902 = vmatmul.mubr.f32.gmra.mrb[0].mxu0 %v1730
      %v1903 = vpop.f32.mrb[0].mxu0
      %v1904 = vadd.f32 0.0, %v1903
      %v1905 = vpop.f32.mrb[0].mxu0
      %1906 = vmatprep.mubr.f32.mxu0 0.0
      %1907 = vmatmul.mubr.f32.gmra.mrb[0].mxu0 %v1733
      %v1908 = vpop.f32.mrb[0].mxu0
      %v1909 = vadd.f32 0.0, %v1908
      %v1910 = vpop.f32.mrb[0].mxu0
      %1911 = vmatprep.mubr.f32.mxu0 0.0
      %1912 = vmatmul.mubr.f32.gmra.mrb[0].mxu0 %v1736
      %v1913 = vpop.f32.mrb[0].mxu0
      %v1914 = vadd.f32 0.0, %v1913
      %v1915 = vpop.f32.mrb[0].mxu0
      %1916 = vmatprep.mubr.f32.mxu0 0.0
      %1917 = vmatmul.mubr.f32.gmra.mrb[0].mxu0 %v1739
      %v1918 = vpop.f32.mrb[0].mxu0
      %v1919 = vadd.f32 0.0, %v1918
      %v1920 = vpop.f32.mrb[0].mxu0
      %1921 = vmatprep.mubr.f32.mxu0 0.0
      %1922 = vmatmul.mubr.f32.gmra.mrb[0].mxu0 %v1742
      %v1923 = vpop.f32.mrb[0].mxu0
      %v1924 = vadd.f32 0.0, %v1923
      %v1925 = vpop.f32.mrb[0].mxu0
      %1926 = vmatprep.mubr.f32.mxu0 0.0
      %1927 = vmatmul.mubr.f32.gmra.mrb[0].mxu0 %v1745
      %v1928 = vpop.f32.mrb[0].mxu0
      %v1929 = vadd.f32 0.0, %v1928
      %v1930 = vpop.f32.mrb[0].mxu0
      %1931 = vmatprep.mubr.f32.mxu0 0.0
      %1932 = vmatmul.mubr.f32.gmra.mrb[0].mxu0 %v1748
      %v1933 = vpop.f32.mrb[0].mxu0
      %v1934 = vadd.f32 0.0, %v1933
      %v1935 = vpop.f32.mrb[0].mxu0
      %1936 = vmatprep.mubr.f32.mxu0 0.0
      %1937 = vmatmul.mubr.f32.gmra.mrb[0].mxu0 %v1751
      %v1938 = vpop.f32.mrb[0].mxu0
      %v1939 = vadd.f32 0.0, %v1938
      %v1940 = vpop.f32.mrb[0].mxu0
      %1941 = vmatprep.mubr.f32.mxu0 0.0
      %1942 = vmatmul.mubr.f32.gmra.mrb[0].mxu0 %v1754
      %v1943 = vpop.f32.mrb[0].mxu0
      %v1944 = vadd.f32 0.0, %v1943
      %v1945 = vpop.f32.mrb[0].mxu0
      %1946 = vmatprep.mubr.f32.mxu0 0.0
      %1947 = vmatmul.mubr.f32.gmra.mrb[0].mxu0 %v1757
      %v1948 = vpop.f32.mrb[0].mxu0
      %v1949 = vadd.f32 0.0, %v1948
      %v1950 = vpop.f32.mrb[0].mxu0
      %1951 = vmatprep.mubr.f32.mxu0 0.0
      %1952 = vmatmul.mubr.f32.gmra.mrb[0].mxu0 %v1760
      %v1953 = vpop.f32.mrb[0].mxu0
      %v1954 = vadd.f32 0.0, %v1953
      %v1955 = vpop.f32.mrb[0].mxu0
      %1956 = vmatprep.mubr.f32.mxu0 0.0
      %1957 = vmatmul.mubr.f32.gmra.mrb[0].mxu0 %v1763
      %v1958 = vpop.f32.mrb[0].mxu0
      %v1959 = vadd.f32 0.0, %v1958
      %v1960 = vpop.f32.mrb[0].mxu0
      %1961 = vmatprep.mubr.f32.mxu0 0.0
      %1962 = vmatmul.mubr.f32.gmra.mrb[0].mxu0 %v1766
      %v1963 = vpop.f32.mrb[0].mxu0
      %v1964 = vadd.f32 0.0, %v1963
      %v1965 = vpop.f32.mrb[0].mxu0
      %1966 = vmatprep.mubr.f32.mxu0 0.0
      %1967 = vmatmul.mubr.f32.gmra.mrb[0].mxu0 %v1769
      %v1968 = vpop.f32.mrb[0].mxu0
      %v1969 = vadd.f32 0.0, %v1968
      %v1970 = vpop.f32.mrb[0].mxu0
      %1971 = vmatprep.mubr.f32.mxu0 0.0
      %1972 = vmatmul.mubr.f32.gmra.mrb[0].mxu0 %v1772
      %v1973 = vpop.f32.mrb[0].mxu0
      %v1974 = vadd.f32 0.0, %v1973
      %v1975 = vpop.f32.mrb[0].mxu0
      %1976 = vmatprep.mubr.f32.mxu0 0.0
      %1977 = vmatmul.mubr.f32.gmra.mrb[0].mxu0 %v1775
      %v1978 = vpop.f32.mrb[0].mxu0
      %v1979 = vadd.f32 0.0, %v1978
      %v1980 = vpop.f32.mrb[0].mxu0
      %1981 = vmatprep.mubr.f32.mxu0 0.0
      %1982 = vmatmul.mubr.f32.gmra.mrb[0].mxu0 %v1778
      %v1983 = vpop.f32.mrb[0].mxu0
      %v1984 = vadd.f32 0.0, %v1983
      %v1985 = vpop.f32.mrb[0].mxu0
      %1986 = vmatprep.mubr.f32.mxu0 0.0
      %1987 = vmatmul.mubr.f32.gmra.mrb[0].mxu0 %v1781
      %v1988 = vpop.f32.mrb[0].mxu0
      %v1989 = vadd.f32 0.0, %v1988
      %v1990 = vpop.f32.mrb[0].mxu0
      %1991 = vmatprep.mubr.f32.mxu0 0.0
      %1992 = vmatmul.mubr.f32.gmra.mrb[0].mxu0 %v1784
      %v1993 = vpop.f32.mrb[0].mxu0
      %v1994 = vadd.f32 0.0, %v1993
      %v1995 = vpop.f32.mrb[0].mxu0
      %1996 = vmatprep.mubr.f32.mxu0 0.0
      %1997 = vmatmul.mubr.f32.gmra.mrb[0].mxu0 %v1787
      %v1998 = vpop.f32.mrb[0].mxu0
      %v1999 = vadd.f32 0.0, %v1998
      %v2000 = vpop.f32.mrb[0].mxu0
      %2001 = vmatprep.mubr.f32.mxu0 0.0
      %2002 = vmatmul.mubr.f32.gmra.mrb[0].mxu0 %v1790
      %v2003 = vpop.f32.mrb[0].mxu0
      %v2004 = vadd.f32 0.0, %v2003
      %v2005 = vpop.f32.mrb[0].mxu0
      %2006 = vmatprep.mubr.f32.mxu0 0.0
      %2007 = vmatmul.mubr.f32.gmra.mrb[0].mxu0 %v1793
      %v2008 = vpop.f32.mrb[0].mxu0
      %v2009 = vadd.f32 0.0, %v2008
      %v2010 = vpop.f32.mrb[0].mxu0
      %2011 = vmatprep.mubr.f32.mxu0 0.0
      %2012 = vmatmul.mubr.f32.gmra.mrb[0].mxu0 %v1796
      %v2013 = vpop.f32.mrb[0].mxu0
      %v2014 = vadd.f32 0.0, %v2013
      %v2015 = vpop.f32.mrb[0].mxu0
      %2016 = vmatprep.mubr.f32.mxu0 0.0
      %2017 = vmatmul.mubr.f32.gmra.mrb[0].mxu0 %v1799
      %v2018 = vpop.f32.mrb[0].mxu0
      %v2019 = vadd.f32 0.0, %v2018
      %v2020 = vpop.f32.mrb[0].mxu0
      %2021 = vmatprep.mubr.f32.mxu0 0.0
      %2022 = vmatmul.mubr.f32.gmra.mrb[0].mxu0 %v1802
      %v2023 = vpop.f32.mrb[0].mxu0
      %v2024 = vadd.f32 0.0, %v2023
      %v2025 = vpop.f32.mrb[0].mxu0
      %2026 = vmatprep.mubr.f32.mxu0 0.0
      %2027 = vmatmul.mubr.f32.gmra.mrb[0].mxu0 %v1805
      %v2028 = vpop.f32.mrb[0].mxu0
      %v2029 = vadd.f32 0.0, %v2028
      %v2030 = vpop.f32.mrb[0].mxu0
      %2031 = vmatprep.mubr.f32.mxu0 0.0
      %2032 = vmatmul.mubr.f32.gmra.mrb[0].mxu0 %v1808
      %v2033 = vpop.f32.mrb[0].mxu0
      %v2034 = vadd.f32 0.0, %v2033
      %v2035 = vpop.f32.mrb[0].mxu0
      %2036 = vmatprep.mubr.f32.mxu0 0.0
      %2037 = vmatmul.mubr.f32.gmra.mrb[0].mxu0 %v1811
      %v2038 = vpop.f32.mrb[0].mxu0
      %v2039 = vadd.f32 0.0, %v2038
      %v2040 = vpop.f32.mrb[0].mxu0
      %2041 = vdwg.mxu0
      %2042 = vst.msk [vmem:[%s364] sm:$0xff] %vm1480, %v1884
      %2043 = vst.msk [vmem:[%s364 + $0x8] sm:$0xff] %vm1480, %v1889
      %2044 = vst.msk [vmem:[%s364 + $0x10] sm:$0xff] %vm1480, %v1894
      %2045 = vst.msk [vmem:[%s364 + $0x18] sm:$0xff] %vm1480, %v1899
      %2046 = vst.msk [vmem:[%s364 + $0x20] sm:$0xff] %vm1480, %v1904
      %2047 = vst.msk [vmem:[%s364 + $0x28] sm:$0xff] %vm1480, %v1909
      %2048 = vst.msk [vmem:[%s364 + $0x30] sm:$0xff] %vm1480, %v1914
      %2049 = vst.msk [vmem:[%s364 + $0x38] sm:$0xff] %vm1480, %v1919
      %2050 = vst.msk [vmem:[%s364 + $0x40] sm:$0xff] %vm1480, %v1924
      %2051 = vst.msk [vmem:[%s364 + $0x48] sm:$0xff] %vm1480, %v1929
      %2052 = vst.msk [vmem:[%s364 + $0x50] sm:$0xff] %vm1480, %v1934
      %2053 = vst.msk [vmem:[%s364 + $0x58] sm:$0xff] %vm1480, %v1939
      %2054 = vst.msk [vmem:[%s364 + $0x60] sm:$0xff] %vm1480, %v1944
      %2055 = vst.msk [vmem:[%s364 + $0x68] sm:$0xff] %vm1480, %v1949
      %2056 = vst.msk [vmem:[%s364 + $0x70] sm:$0xff] %vm1480, %v1954
      %2057 = vst.msk [vmem:[%s364 + $0x78] sm:$0xff] %vm1480, %v1959
      %2058 = vst.msk [vmem:[%s364 + $0x80] sm:$0xff] %vm1480, %v1964
      %2059 = vst.msk [vmem:[%s364 + $0x88] sm:$0xff] %vm1480, %v1969
      %2060 = vst.msk [vmem:[%s364 + $0x90] sm:$0xff] %vm1480, %v1974
      %2061 = vst.msk [vmem:[%s364 + $0x98] sm:$0xff] %vm1480, %v1979
      %2062 = vst.msk [vmem:[%s364 + $0xa0] sm:$0xff] %vm1480, %v1984
      %2063 = vst.msk [vmem:[%s364 + $0xa8] sm:$0xff] %vm1480, %v1989
      %2064 = vst.msk [vmem:[%s364 + $0xb0] sm:$0xff] %vm1480, %v1994
      %2065 = vst.msk [vmem:[%s364 + $0xb8] sm:$0xff] %vm1480, %v1999
      %2066 = vst.msk [vmem:[%s364 + $0xc0] sm:$0xff] %vm1480, %v2004
      %2067 = vst.msk [vmem:[%s364 + $0xc8] sm:$0xff] %vm1480, %v2009
      %2068 = vst.msk [vmem:[%s364 + $0xd0] sm:$0xff] %vm1480, %v2014
      %2069 = vst.msk [vmem:[%s364 + $0xd8] sm:$0xff] %vm1480, %v2019
      %2070 = vst.msk [vmem:[%s364 + $0xe0] sm:$0xff] %vm1480, %v2024
      %2071 = vst.msk [vmem:[%s364 + $0xe8] sm:$0xff] %vm1480, %v2029
      %2072 = vst.msk [vmem:[%s364 + $0xf0] sm:$0xff] %vm1480, %v2034
      %2073 = vst.msk [vmem:[%s364 + $0xf8] sm:$0xff] %vm1480, %v2039
      %s2074 = smul.u32 16, %s20
      %p2075 = scmp.lt.s32.totalorder %s19, 1
      %s2076 = scalar_select %p2075, %s19, 1
      %p2077 = scmp.lt.s32.totalorder %s2074, 15
      %s2078 = scalar_select %p2077, %s2074, 15
      %s2079 = smul.addr %s2078, 2
      %s2080 = smul.addr %s2076, 32
      %s2081 = sadd.s32 %s2079, %s2080
      %s2082 = smul.addr %s2081, 8
      %s2083 = scalar_lea.vmem %s4, %s2082
      // Predicated region
      $region37: #{upsample_forward.1} parent=35 // pred_check
        %p2084 = pneg %p168
      $region38: #{upsample_forward.1} parent=35 // pred_check_branch
        %2086 = sbr.rel (%p2084) target = $region40
      $region39: #{upsample_forward.1} parent=35 // pred_region
        %s2087 = smul.u32 16, %s20
      $region40: #{upsample_forward.1} parent=35 // pred_fallthru
        _
    $region36: #{upsample_forward.1} parent=5 // pred_fallthru
      _
    %p2088 = scmp.le.s32.totalorder 2, %s10
    // Predicated region
    $region41: #{upsample_forward.1} parent=5 // pred_check
      %p2089 = pneg %p2088
    $region42: #{upsample_forward.1} parent=5 // pred_check_branch
      %2091 = sbr.rel (%p2089) target = $region44
    $region43: #{upsample_forward.1} parent=5 // pred_region
      %s2092 = ssub.s32 %s10, 2
      // Predicated region
      $region45: #{upsample_forward.1} parent=43 // pred_check
        %p2093 = pneg %p174
      $region46: #{upsample_forward.1} parent=43 // pred_check_branch
        %2095 = sbr.rel (%p2093) target = $region48
      $region47: #{upsample_forward.1} parent=43 // pred_region
        %s2096 = smul.u32 16, %s22
        %p2097 = scmp.lt.s32.totalorder %s21, 1
        %s2098 = scalar_select %p2097, %s21, 1
        %p2099 = scmp.lt.s32.totalorder %s2096, 15
        %s2100 = scalar_select %p2099, %s2096, 15
        %s2101 = smul.addr %s2100, 2
        %s2102 = smul.addr %s2098, 32
        %s2103 = sadd.s32 %s2101, %s2102
        %s2104 = smul.addr %s2103, 8
        %s2105 = scalar_lea.vmem %s4, %s2104
      $region48: #{upsample_forward.1} parent=43 // pred_fallthru
        _
    $region44: #{upsample_forward.1} parent=5 // pred_fallthru
      _
  $region6: #{upsample_forward.1} parent=0 // loop_footer
    %s14 = sadd.s32 1, %s10
  $region7: #{upsample_forward.1} parent=0 // loop_footer_branch
    %9 = sbr.rel target = $region3
  $region8: #{upsample_forward.1} parent=0 // loop_exit
    _

</llo_original>
